<compile_context>
chip_gen: v7x
topology: tpu7x:2x2x1
jax: 0.10.0
libtpu: 0.0.40
codegen_flags: <defaults>
</compile_context>

<pallas_src>
import jax
import jax.numpy as jnp
from jax.experimental import pallas as pl
from jax.experimental.pallas import tpu as pltpu

KH = KW = 3   # conv kernel size
PAD = 1       # spatial padding
EPS = 1e-3    # BatchNorm eps
LANE = 128    # TPU lane width


def _round_up(x, m):
    return (x + m - 1) // m * m


def _pick_row_tile(H, W):
    """Largest TH dividing H with TH*W <= 128 rows per matmul (acc <= 16 vregs)."""
    for th in (128, 64, 32, 16, 8, 4, 2, 1):
        if H % th == 0 and th * W <= 128:
            return th
    return 1


def _conv_bn_relu_kernel(x0_ref, x1_ref, x2_ref, w_ref, shift_ref, o_ref):
    """Fused 3x3 conv (stride 1) + folded-BN shift + ReLU for one row tile.

    x{kh}_ref: (1, TH, W+2, Cin_p)   rows [i*TH+kh, i*TH+kh+TH) of the padded image
    w_ref:     (KH, KW, Cin_p, Cout_p)  BN-scale-folded conv weights (HWIO, padded)
    shift_ref: (1, Cout_p)              folded BN shift = beta + scale*(bias-mean)
    o_ref:     (1, TH, W, Cout_p)
    """
    _, TH, W, Cout_p = o_ref.shape
    Cin_p = x0_ref.shape[-1]
    x_refs = (x0_ref, x1_ref, x2_ref)

    acc = jnp.zeros((TH * W, Cout_p), dtype=jnp.float32)
    # 9 full-width MXU matmuls: K = Cin_p = 128, N = Cout_p = 128, M = TH*W.
    for kh in range(KH):
        for kw in range(KW):
            # Lane dim (Cin_p) is full-width; merging (TH, W) is layout-free
            # when W is a multiple of 8 (kw=1,2 only cost a sublane realign).
            patch = x_refs[kh][0, :, kw:kw + W, :].reshape(TH * W, Cin_p)
            acc = acc + jnp.dot(patch, w_ref[kh, kw],
                                preferred_element_type=jnp.float32)

    y = jnp.maximum(acc + shift_ref[...], 0.0)          # (TH*W, Cout_p)
    o_ref[...] = y.reshape(1, TH, W, Cout_p).astype(o_ref.dtype)


def basic_conv2d(x_nchw, weight_oihw, bias, gamma, beta, running_mean,
                 running_var):
    """Forward pass of BasicConv2d (eval mode) using a Pallas TPU kernel.

    x_nchw:      (N, Cin, H, W)   float32, PyTorch layout
    weight_oihw: (Cout, Cin, KH, KW)
    bias, gamma, beta, running_mean, running_var: (Cout,)
    returns:     (N, Cout, H, W)  float32, PyTorch layout
    """
    N, Cin, H, W = x_nchw.shape
    Cout = weight_oihw.shape[0]
    Cin_p = _round_up(Cin, LANE)
    Cout_p = _round_up(Cout, LANE)
    TH = _pick_row_tile(H, W)
    Wp = W + 2 * PAD

    # ---- glue (single fused XLA pass): layout + spatial & channel zero-pad.
    x_nhwc = jnp.transpose(x_nchw, (0, 2, 3, 1)).astype(jnp.float32)
    x_pad = jnp.pad(x_nhwc, ((0, 0), (PAD, PAD), (PAD, PAD), (0, Cin_p - Cin)))
    # Three row-shifted views -> halo-free, block-aligned H tiling for the kh taps.
    x_views = tuple(x_pad[:, kh:kh + H] for kh in range(KH))   # (N, H, Wp, Cin_p)

    # ---- fold BN into the conv: scale into the weights, shift stays as a bias.
    scale = (gamma / jnp.sqrt(running_var + EPS)).astype(jnp.float32)    # (Cout,)
    shift = (beta + scale * (bias - running_mean)).astype(jnp.float32)   # (Cout,)
    w_hwio = jnp.transpose(weight_oihw, (2, 3, 1, 0)).astype(jnp.float32)
    w_folded = w_hwio * scale[None, None, None, :]                       # HWIO
    w_p = jnp.pad(w_folded,
                  ((0, 0), (0, 0), (0, Cin_p - Cin), (0, Cout_p - Cout)))
    shift_p = jnp.pad(shift, (0, Cout_p - Cout)).reshape(1, Cout_p)

    x_map = lambda b, i: (b, i, 0, 0)
    out_nhwc = pl.pallas_call(
        _conv_bn_relu_kernel,
        out_shape=jax.ShapeDtypeStruct((N, H, W, Cout_p), jnp.float32),
        grid=(N, H // TH),
        in_specs=[
            pl.BlockSpec((1, TH, Wp, Cin_p), x_map),            # kh = 0 rows
            pl.BlockSpec((1, TH, Wp, Cin_p), x_map),            # kh = 1 rows
            pl.BlockSpec((1, TH, Wp, Cin_p), x_map),            # kh = 2 rows
            pl.BlockSpec((KH, KW, Cin_p, Cout_p), lambda b, i: (0, 0, 0, 0)),
            pl.BlockSpec((1, Cout_p), lambda b, i: (0, 0)),
        ],
        out_specs=pl.BlockSpec((1, TH, W, Cout_p), x_map),
        compiler_params=pltpu.CompilerParams(
            dimension_semantics=("parallel", "parallel"),
            vmem_limit_bytes=32 * 1024 * 1024),
    )(*x_views, w_p, shift_p)

    # ---- back to PyTorch layout; drop the padded output channels.
    return jnp.transpose(out_nhwc[..., :Cout], (0, 3, 1, 2))    # N, Cout, H, W


def _reference(x_nchw, weight_oihw, bias, gamma, beta, running_mean,
               running_var):
    """Pure-JAX reference (lax conv) for a correctness check."""
    y = jax.lax.conv_general_dilated(
        x_nchw, weight_oihw, window_strides=(1, 1),
        padding=((PAD, PAD), (PAD, PAD)),
        dimension_numbers=("NCHW", "OIHW", "NCHW"))
    y = y + bias[None, :, None, None]
    y = (y - running_mean[None, :, None, None]) / jnp.sqrt(
        running_var[None, :, None, None] + EPS)
    y = y * gamma[None, :, None, None] + beta[None, :, None, None]
    return jnp.maximum(y, 0.0)


if __name__ == "__main__":
    key = jax.random.PRNGKey(0)
    N, Cin, Cout, H, W = 2, 4, 8, 16, 16

    k1, k2, k3, k4, k5, k6, k7 = jax.random.split(key, 7)
    x = jax.random.normal(k1, (N, Cin, H, W), dtype=jnp.float32)
    weight = jax.random.normal(k2, (Cout, Cin, KH, KW), dtype=jnp.float32) * 0.1
    bias = jax.random.normal(k3, (Cout,), dtype=jnp.float32) * 0.1
    gamma = 1.0 + 0.1 * jax.random.normal(k4, (Cout,), dtype=jnp.float32)
    beta = 0.1 * jax.random.normal(k5, (Cout,), dtype=jnp.float32)
    running_mean = 0.1 * jax.random.normal(k6, (Cout,), dtype=jnp.float32)
    running_var = jnp.abs(jax.random.normal(k7, (Cout,), dtype=jnp.float32)) + 0.5

    out = basic_conv2d(x, weight, bias, gamma, beta, running_mean, running_var)
    out = jax.block_until_ready(out)

    ref = _reference(x, weight, bias, gamma, beta, running_mean, running_var)
    assert out.shape == (N, Cout, H, W)
    assert jnp.allclose(out, ref, atol=1e-3, rtol=1e-3), "mismatch vs reference"

    print("KERNEL_OK")
</pallas_src>

<mosaic_0001>
module attributes {stable_mosaic.version = 11 : i64} {
  func.func @_conv_bn_relu_kernel(%arg0: i32, %arg1: i32, %arg2: memref<1x8x18x128xf32, #tpu.memory_space<vmem>>, %arg3: memref<1x8x18x128xf32, #tpu.memory_space<vmem>>, %arg4: memref<1x8x18x128xf32, #tpu.memory_space<vmem>>, %arg5: memref<3x3x128x128xf32, #tpu.memory_space<vmem>>, %arg6: memref<1x128xf32, #tpu.memory_space<vmem>>, %arg7: memref<1x8x16x128xf32, #tpu.memory_space<vmem>>) attributes {dimension_semantics = [#tpu.dimension_semantics<parallel>, #tpu.dimension_semantics<parallel>], iteration_bounds = array<i64: 2, 2>, scalar_prefetch = 0 : i64, scratch_operands = 0 : i64, tpu.core_type = #tpu.core_type<tc>, window_params = [{transform_indices = @transform_0, window_bounds = array<i64: 1, 8, 18, 128>}, {transform_indices = @transform_1, window_bounds = array<i64: 1, 8, 18, 128>}, {transform_indices = @transform_2, window_bounds = array<i64: 1, 8, 18, 128>}, {pipeline_mode = #tpu.pipeline_mode<synchronous>, transform_indices = @transform_3, window_bounds = array<i64: 3, 3, 128, 128>}, {pipeline_mode = #tpu.pipeline_mode<synchronous>, transform_indices = @transform_4, window_bounds = array<i64: 1, 128>}, {transform_indices = @transform_5, window_bounds = array<i64: 1, 8, 16, 128>}]} {
    %cst = arith.constant 0.000000e+00 : f32
    %0 = vector.broadcast %cst : f32 to vector<128x128xf32>
    %c0 = arith.constant 0 : index
    %c0_0 = arith.constant 0 : index
    %c0_1 = arith.constant 0 : index
    %c0_2 = arith.constant 0 : index
    %1 = vector.load %arg2[%c0, %c0_0, %c0_1, %c0_2] : memref<1x8x18x128xf32, #tpu.memory_space<vmem>>, vector<1x8x16x128xf32>
    %2 = vector.shape_cast %1 : vector<1x8x16x128xf32> to vector<8x16x128xf32>
    %3 = vector.shape_cast %2 : vector<8x16x128xf32> to vector<128x128xf32>
    %c0_3 = arith.constant 0 : index
    %c0_4 = arith.constant 0 : index
    %c0_5 = arith.constant 0 : index
    %c0_6 = arith.constant 0 : index
    %4 = vector.load %arg5[%c0_3, %c0_4, %c0_5, %c0_6] : memref<3x3x128x128xf32, #tpu.memory_space<vmem>>, vector<1x1x128x128xf32>
    %5 = vector.shape_cast %4 : vector<1x1x128x128xf32> to vector<128x128xf32>
    %cst_7 = arith.constant dense<0.000000e+00> : vector<128x128xf32>
    %6 = tpu.matmul %3, %5, %cst_7 {dimension_numbers = #tpu.dot_dimension_numbers<[1], [0], [0], [1], [0, 0, 1, 1], [], []>} : vector<128x128xf32>, vector<128x128xf32>, vector<128x128xf32> -> vector<128x128xf32>
    %7 = arith.addf %0, %6 : vector<128x128xf32>
    %c0_8 = arith.constant 0 : index
    %c0_9 = arith.constant 0 : index
    %c1 = arith.constant 1 : index
    %c0_10 = arith.constant 0 : index
    %8 = vector.load %arg2[%c0_8, %c0_9, %c1, %c0_10] : memref<1x8x18x128xf32, #tpu.memory_space<vmem>>, vector<1x8x16x128xf32>
    %9 = vector.shape_cast %8 : vector<1x8x16x128xf32> to vector<8x16x128xf32>
    %10 = vector.shape_cast %9 : vector<8x16x128xf32> to vector<128x128xf32>
    %c0_11 = arith.constant 0 : index
    %c1_12 = arith.constant 1 : index
    %c0_13 = arith.constant 0 : index
    %c0_14 = arith.constant 0 : index
    %11 = vector.load %arg5[%c0_11, %c1_12, %c0_13, %c0_14] : memref<3x3x128x128xf32, #tpu.memory_space<vmem>>, vector<1x1x128x128xf32>
    %12 = vector.shape_cast %11 : vector<1x1x128x128xf32> to vector<128x128xf32>
    %cst_15 = arith.constant dense<0.000000e+00> : vector<128x128xf32>
    %13 = tpu.matmul %10, %12, %cst_15 {dimension_numbers = #tpu.dot_dimension_numbers<[1], [0], [0], [1], [0, 0, 1, 1], [], []>} : vector<128x128xf32>, vector<128x128xf32>, vector<128x128xf32> -> vector<128x128xf32>
    %14 = arith.addf %7, %13 : vector<128x128xf32>
    %c0_16 = arith.constant 0 : index
    %c0_17 = arith.constant 0 : index
    %c2 = arith.constant 2 : index
    %c0_18 = arith.constant 0 : index
    %15 = vector.load %arg2[%c0_16, %c0_17, %c2, %c0_18] : memref<1x8x18x128xf32, #tpu.memory_space<vmem>>, vector<1x8x16x128xf32>
    %16 = vector.shape_cast %15 : vector<1x8x16x128xf32> to vector<8x16x128xf32>
    %17 = vector.shape_cast %16 : vector<8x16x128xf32> to vector<128x128xf32>
    %c0_19 = arith.constant 0 : index
    %c2_20 = arith.constant 2 : index
    %c0_21 = arith.constant 0 : index
    %c0_22 = arith.constant 0 : index
    %18 = vector.load %arg5[%c0_19, %c2_20, %c0_21, %c0_22] : memref<3x3x128x128xf32, #tpu.memory_space<vmem>>, vector<1x1x128x128xf32>
    %19 = vector.shape_cast %18 : vector<1x1x128x128xf32> to vector<128x128xf32>
    %cst_23 = arith.constant dense<0.000000e+00> : vector<128x128xf32>
    %20 = tpu.matmul %17, %19, %cst_23 {dimension_numbers = #tpu.dot_dimension_numbers<[1], [0], [0], [1], [0, 0, 1, 1], [], []>} : vector<128x128xf32>, vector<128x128xf32>, vector<128x128xf32> -> vector<128x128xf32>
    %21 = arith.addf %14, %20 : vector<128x128xf32>
    %c0_24 = arith.constant 0 : index
    %c0_25 = arith.constant 0 : index
    %c0_26 = arith.constant 0 : index
    %c0_27 = arith.constant 0 : index
    %22 = vector.load %arg3[%c0_24, %c0_25, %c0_26, %c0_27] : memref<1x8x18x128xf32, #tpu.memory_space<vmem>>, vector<1x8x16x128xf32>
    %23 = vector.shape_cast %22 : vector<1x8x16x128xf32> to vector<8x16x128xf32>
    %24 = vector.shape_cast %23 : vector<8x16x128xf32> to vector<128x128xf32>
    %c1_28 = arith.constant 1 : index
    %c0_29 = arith.constant 0 : index
    %c0_30 = arith.constant 0 : index
    %c0_31 = arith.constant 0 : index
    %25 = vector.load %arg5[%c1_28, %c0_29, %c0_30, %c0_31] : memref<3x3x128x128xf32, #tpu.memory_space<vmem>>, vector<1x1x128x128xf32>
    %26 = vector.shape_cast %25 : vector<1x1x128x128xf32> to vector<128x128xf32>
    %cst_32 = arith.constant dense<0.000000e+00> : vector<128x128xf32>
    %27 = tpu.matmul %24, %26, %cst_32 {dimension_numbers = #tpu.dot_dimension_numbers<[1], [0], [0], [1], [0, 0, 1, 1], [], []>} : vector<128x128xf32>, vector<128x128xf32>, vector<128x128xf32> -> vector<128x128xf32>
    %28 = arith.addf %21, %27 : vector<128x128xf32>
    %c0_33 = arith.constant 0 : index
    %c0_34 = arith.constant 0 : index
    %c1_35 = arith.constant 1 : index
    %c0_36 = arith.constant 0 : index
    %29 = vector.load %arg3[%c0_33, %c0_34, %c1_35, %c0_36] : memref<1x8x18x128xf32, #tpu.memory_space<vmem>>, vector<1x8x16x128xf32>
    %30 = vector.shape_cast %29 : vector<1x8x16x128xf32> to vector<8x16x128xf32>
    %31 = vector.shape_cast %30 : vector<8x16x128xf32> to vector<128x128xf32>
    %c1_37 = arith.constant 1 : index
    %c1_38 = arith.constant 1 : index
    %c0_39 = arith.constant 0 : index
    %c0_40 = arith.constant 0 : index
    %32 = vector.load %arg5[%c1_37, %c1_38, %c0_39, %c0_40] : memref<3x3x128x128xf32, #tpu.memory_space<vmem>>, vector<1x1x128x128xf32>
    %33 = vector.shape_cast %32 : vector<1x1x128x128xf32> to vector<128x128xf32>
    %cst_41 = arith.constant dense<0.000000e+00> : vector<128x128xf32>
    %34 = tpu.matmul %31, %33, %cst_41 {dimension_numbers = #tpu.dot_dimension_numbers<[1], [0], [0], [1], [0, 0, 1, 1], [], []>} : vector<128x128xf32>, vector<128x128xf32>, vector<128x128xf32> -> vector<128x128xf32>
    %35 = arith.addf %28, %34 : vector<128x128xf32>
    %c0_42 = arith.constant 0 : index
    %c0_43 = arith.constant 0 : index
    %c2_44 = arith.constant 2 : index
    %c0_45 = arith.constant 0 : index
    %36 = vector.load %arg3[%c0_42, %c0_43, %c2_44, %c0_45] : memref<1x8x18x128xf32, #tpu.memory_space<vmem>>, vector<1x8x16x128xf32>
    %37 = vector.shape_cast %36 : vector<1x8x16x128xf32> to vector<8x16x128xf32>
    %38 = vector.shape_cast %37 : vector<8x16x128xf32> to vector<128x128xf32>
    %c1_46 = arith.constant 1 : index
    %c2_47 = arith.constant 2 : index
    %c0_48 = arith.constant 0 : index
    %c0_49 = arith.constant 0 : index
    %39 = vector.load %arg5[%c1_46, %c2_47, %c0_48, %c0_49] : memref<3x3x128x128xf32, #tpu.memory_space<vmem>>, vector<1x1x128x128xf32>
    %40 = vector.shape_cast %39 : vector<1x1x128x128xf32> to vector<128x128xf32>
    %cst_50 = arith.constant dense<0.000000e+00> : vector<128x128xf32>
    %41 = tpu.matmul %38, %40, %cst_50 {dimension_numbers = #tpu.dot_dimension_numbers<[1], [0], [0], [1], [0, 0, 1, 1], [], []>} : vector<128x128xf32>, vector<128x128xf32>, vector<128x128xf32> -> vector<128x128xf32>
    %42 = arith.addf %35, %41 : vector<128x128xf32>
    %c0_51 = arith.constant 0 : index
    %c0_52 = arith.constant 0 : index
    %c0_53 = arith.constant 0 : index
    %c0_54 = arith.constant 0 : index
    %43 = vector.load %arg4[%c0_51, %c0_52, %c0_53, %c0_54] : memref<1x8x18x128xf32, #tpu.memory_space<vmem>>, vector<1x8x16x128xf32>
    %44 = vector.shape_cast %43 : vector<1x8x16x128xf32> to vector<8x16x128xf32>
    %45 = vector.shape_cast %44 : vector<8x16x128xf32> to vector<128x128xf32>
    %c2_55 = arith.constant 2 : index
    %c0_56 = arith.constant 0 : index
    %c0_57 = arith.constant 0 : index
    %c0_58 = arith.constant 0 : index
    %46 = vector.load %arg5[%c2_55, %c0_56, %c0_57, %c0_58] : memref<3x3x128x128xf32, #tpu.memory_space<vmem>>, vector<1x1x128x128xf32>
    %47 = vector.shape_cast %46 : vector<1x1x128x128xf32> to vector<128x128xf32>
    %cst_59 = arith.constant dense<0.000000e+00> : vector<128x128xf32>
    %48 = tpu.matmul %45, %47, %cst_59 {dimension_numbers = #tpu.dot_dimension_numbers<[1], [0], [0], [1], [0, 0, 1, 1], [], []>} : vector<128x128xf32>, vector<128x128xf32>, vector<128x128xf32> -> vector<128x128xf32>
    %49 = arith.addf %42, %48 : vector<128x128xf32>
    %c0_60 = arith.constant 0 : index
    %c0_61 = arith.constant 0 : index
    %c1_62 = arith.constant 1 : index
    %c0_63 = arith.constant 0 : index
    %50 = vector.load %arg4[%c0_60, %c0_61, %c1_62, %c0_63] : memref<1x8x18x128xf32, #tpu.memory_space<vmem>>, vector<1x8x16x128xf32>
    %51 = vector.shape_cast %50 : vector<1x8x16x128xf32> to vector<8x16x128xf32>
    %52 = vector.shape_cast %51 : vector<8x16x128xf32> to vector<128x128xf32>
    %c2_64 = arith.constant 2 : index
    %c1_65 = arith.constant 1 : index
    %c0_66 = arith.constant 0 : index
    %c0_67 = arith.constant 0 : index
    %53 = vector.load %arg5[%c2_64, %c1_65, %c0_66, %c0_67] : memref<3x3x128x128xf32, #tpu.memory_space<vmem>>, vector<1x1x128x128xf32>
    %54 = vector.shape_cast %53 : vector<1x1x128x128xf32> to vector<128x128xf32>
    %cst_68 = arith.constant dense<0.000000e+00> : vector<128x128xf32>
    %55 = tpu.matmul %52, %54, %cst_68 {dimension_numbers = #tpu.dot_dimension_numbers<[1], [0], [0], [1], [0, 0, 1, 1], [], []>} : vector<128x128xf32>, vector<128x128xf32>, vector<128x128xf32> -> vector<128x128xf32>
    %56 = arith.addf %49, %55 : vector<128x128xf32>
    %c0_69 = arith.constant 0 : index
    %c0_70 = arith.constant 0 : index
    %c2_71 = arith.constant 2 : index
    %c0_72 = arith.constant 0 : index
    %57 = vector.load %arg4[%c0_69, %c0_70, %c2_71, %c0_72] : memref<1x8x18x128xf32, #tpu.memory_space<vmem>>, vector<1x8x16x128xf32>
    %58 = vector.shape_cast %57 : vector<1x8x16x128xf32> to vector<8x16x128xf32>
    %59 = vector.shape_cast %58 : vector<8x16x128xf32> to vector<128x128xf32>
    %c2_73 = arith.constant 2 : index
    %c2_74 = arith.constant 2 : index
    %c0_75 = arith.constant 0 : index
    %c0_76 = arith.constant 0 : index
    %60 = vector.load %arg5[%c2_73, %c2_74, %c0_75, %c0_76] : memref<3x3x128x128xf32, #tpu.memory_space<vmem>>, vector<1x1x128x128xf32>
    %61 = vector.shape_cast %60 : vector<1x1x128x128xf32> to vector<128x128xf32>
    %cst_77 = arith.constant dense<0.000000e+00> : vector<128x128xf32>
    %62 = tpu.matmul %59, %61, %cst_77 {dimension_numbers = #tpu.dot_dimension_numbers<[1], [0], [0], [1], [0, 0, 1, 1], [], []>} : vector<128x128xf32>, vector<128x128xf32>, vector<128x128xf32> -> vector<128x128xf32>
    %63 = arith.addf %56, %62 : vector<128x128xf32>
    %c0_78 = arith.constant 0 : index
    %c0_79 = arith.constant 0 : index
    %64 = vector.load %arg6[%c0_78, %c0_79] : memref<1x128xf32, #tpu.memory_space<vmem>>, vector<1x128xf32>
    %65 = vector.broadcast %64 : vector<1x128xf32> to vector<128x128xf32>
    %66 = arith.addf %63, %65 : vector<128x128xf32>
    %cst_80 = arith.constant 0.000000e+00 : f32
    %67 = vector.broadcast %cst_80 : f32 to vector<128x128xf32>
    %68 = arith.maximumf %66, %67 : vector<128x128xf32>
    %69 = vector.shape_cast %68 : vector<128x128xf32> to vector<1x8x16x128xf32>
    %c0_81 = arith.constant 0 : index
    %c0_82 = arith.constant 0 : index
    %c0_83 = arith.constant 0 : index
    %c0_84 = arith.constant 0 : index
    %70 = vector.load %arg7[%c0_81, %c0_82, %c0_83, %c0_84] : memref<1x8x16x128xf32, #tpu.memory_space<vmem>>, vector<1x8x16x128xf32>
    tpu.vector_store %arg7[%c0_81, %c0_82, %c0_83, %c0_84], %69 {strides = array<i32>} : memref<1x8x16x128xf32, #tpu.memory_space<vmem>>, vector<1x8x16x128xf32>,
    return
  }
  func.func @transform_0(%arg0: i32, %arg1: i32) -> (i32, i32, i32, i32) {
    %c0_i32 = arith.constant 0 : i32
    %c0_i32_0 = arith.constant 0 : i32
    %c0_i32_1 = arith.constant 0 : i32
    return %arg0, %arg1, %c0_i32, %c0_i32_0 : i32, i32, i32, i32
  }
  func.func @transform_1(%arg0: i32, %arg1: i32) -> (i32, i32, i32, i32) {
    %c0_i32 = arith.constant 0 : i32
    %c0_i32_0 = arith.constant 0 : i32
    %c0_i32_1 = arith.constant 0 : i32
    return %arg0, %arg1, %c0_i32, %c0_i32_0 : i32, i32, i32, i32
  }
  func.func @transform_2(%arg0: i32, %arg1: i32) -> (i32, i32, i32, i32) {
    %c0_i32 = arith.constant 0 : i32
    %c0_i32_0 = arith.constant 0 : i32
    %c0_i32_1 = arith.constant 0 : i32
    return %arg0, %arg1, %c0_i32, %c0_i32_0 : i32, i32, i32, i32
  }
  func.func @transform_3(%arg0: i32, %arg1: i32) -> (i32, i32, i32, i32) {
    %c0_i32 = arith.constant 0 : i32
    %c0_i32_0 = arith.constant 0 : i32
    %c0_i32_1 = arith.constant 0 : i32
    %c0_i32_2 = arith.constant 0 : i32
    %c0_i32_3 = arith.constant 0 : i32
    return %c0_i32, %c0_i32_0, %c0_i32_1, %c0_i32_2 : i32, i32, i32, i32
  }
  func.func @transform_4(%arg0: i32, %arg1: i32) -> (i32, i32) {
    %c0_i32 = arith.constant 0 : i32
    %c0_i32_0 = arith.constant 0 : i32
    %c0_i32_1 = arith.constant 0 : i32
    return %c0_i32, %c0_i32_0 : i32, i32
  }
  func.func @transform_5(%arg0: i32, %arg1: i32) -> (i32, i32, i32, i32) {
    %c0_i32 = arith.constant 0 : i32
    %c0_i32_0 = arith.constant 0 : i32
    %c0_i32_1 = arith.constant 0 : i32
    return %arg0, %arg1, %c0_i32, %c0_i32_0 : i32, i32, i32, i32
  }
}

</mosaic_0001>

<llo_original>
// kernel: tpu_custom_call.1
$region0: #{tpu_custom_call.1}
  #allocation0 [shape = 'u32[]', space=smem, size = 0x4, offset = 0x4, fixed_abs, tag = 'smem constant byte address 0x4 - core index']
  #allocation1 [shape = 'u32[144,128]{1,0:T(1,128)}', space=vmem, size = 0x12000, scoped, tag = 'internal scratch']
  %s0 = inlined_call_operand.vmem [shape: f32[2,16,18,128], index: 0, kind: input, shape index: {}]
  %s1 = inlined_call_operand.vmem [shape: f32[2,16,18,128], index: 1, kind: input, shape index: {}]
  %s2 = inlined_call_operand.vmem [shape: f32[2,16,18,128], index: 2, kind: input, shape index: {}]
  %s3 = inlined_call_operand.vmem [shape: f32[3,3,128,128], index: 3, kind: input, shape index: {}]
  %s4 = inlined_call_operand.vmem [shape: f32[1,128], index: 4, kind: input, shape index: {}]
  %s5 = inlined_call_operand.hbm [shape: f32[2,16,16,128], index: 5, kind: output, shape index: {}]
  %s6 = sld [smem:[#allocation0]]
  $region53: #{tpu_custom_call.1} parent=0
    _
  %s8 = ssub.s32 1, %s6
  %s9 = scalar_select 0, %s8, %s6
  $region1: #{tpu_custom_call.1} parent=0
    #allocation2 [shape = 'u8[131072]{0}', space=vmem, size = 0x20000, scoped, tag = 'output window, operand 0']
    #allocation3 [shape = 's32[2]{0}', space=sflag, size = 0x8, scoped, tag = 'scoped memory for tpu_custom_call.1']
    %10 = vsyncpa [#allocation3], 0
    %s11 = scalar_lea.sflag [#allocation3], 1
    %12 = vsyncpa %s11, 0
    loop: start=0, step=1, limit=6
    $region2: #{tpu_custom_call.1} parent=1 // loop_pre_header
      _
    $region3: #{tpu_custom_call.1} parent=1 // loop_header
      %s14 = sphi 0, %s18
      %p15 = scmp.ge.s32.totalorder %s14, 6
      %s21 = sphi 0, %s33
      %s22 = sphi 0, %s29
      %s23 = sphi 0, %s21
      %s24 = sphi 0, %s22
      %s25 = sphi 0, %s23
      %s26 = sphi 0, %s24
      %s38 = sphi 0, %s40
      %s41 = sphi 0, %s38
      %s42 = sphi 0, %s41
      %s58 = sphi 0, %s42
      %s66 = sphi 0, %s68
      %s69 = sphi 0, %s66
      %s70 = sphi 0, %s69
      %s86 = sphi 0, %s70
      %s94 = sphi 0, %s96
      %s97 = sphi 0, %s94
      %s98 = sphi 0, %s97
      %s114 = sphi 0, %s98
      %s118 = sphi 0, %s118
      %s120 = sphi 0, %s118
      %s121 = sphi 0, %s120
      %s135 = sphi 0, %s121
      %s139 = sphi 0, %s139
      %s141 = sphi 0, %s139
      %s142 = sphi 0, %s141
      %s156 = sphi 0, %s142
      %s164 = sphi 0, %s166
      %s167 = sphi 0, %s164
      %s168 = sphi 0, %s167
      %s184 = sphi 0, %s168
    $region4: #{tpu_custom_call.1} parent=1 // loop_header_branch
      %17 = sbr.rel (%p15) target = $region8
    $region5: #{tpu_custom_call.1} parent=1 // loop_body
      %s19 = ssub.s32 %s14, 1
      %s20 = ssub.s32 %s14, 2
      %s27 = sadd.s32 1, %s22
      %p28 = scmp.ge.s32.totalorder %s27, 2
      %s29 = scalar_select %p28, 0, %s27
      %s30 = sadd.s32 1, %s21
      %s31 = scalar_select %p28, %s30, %s21
      %p32 = scmp.ge.s32.totalorder %s31, 2
      %s33 = scalar_select %p32, 0, %s31
      %s34 = ssub.s32 %s21, %s33
      %s35 = ssub.s32 %s22, %s29
      %s36 = sor.u32 %s34, %s35
      %p37 = scmp.eq.s32.totalorder %s36, 0
      %s39 = sadd.s32 %s38, 1
      %s40 = scalar_select %p37, %s38, %s39
      %p43 = pneg %p37
      %p44 = scmp.eq.s32.totalorder %s14, 3
      %p45 = por %p43, %p44
      %p46 = scmp.ne.s32.totalorder %s38, %s41
      %p47 = scmp.eq.s32.totalorder %s14, 0
      %p48 = por %p46, %p47
      %p49 = scmp.ne.s32.totalorder %s38, %s41
      %p50 = scmp.eq.s32.totalorder %s19, 3
      %p51 = por %p49, %p50
      %p52 = scmp.ne.s32.totalorder %s41, %s42
      %p53 = scmp.eq.s32.totalorder %s19, 0
      %p54 = por %p52, %p53
      %p55 = scmp.ne.s32.totalorder %s41, %s42
      %p56 = scmp.eq.s32.totalorder %s20, 3
      %p57 = por %p55, %p56
      %p59 = scmp.ne.s32.totalorder %s42, %s58
      %p60 = scmp.eq.s32.totalorder %s20, 0
      %p61 = por %p59, %p60
      %s62 = ssub.s32 %s21, %s33
      %s63 = ssub.s32 %s22, %s29
      %s64 = sor.u32 %s62, %s63
      %p65 = scmp.eq.s32.totalorder %s64, 0
      %s67 = sadd.s32 %s66, 1
      %s68 = scalar_select %p65, %s66, %s67
      %p71 = pneg %p65
      %p72 = scmp.eq.s32.totalorder %s14, 3
      %p73 = por %p71, %p72
      %p74 = scmp.ne.s32.totalorder %s66, %s69
      %p75 = scmp.eq.s32.totalorder %s14, 0
      %p76 = por %p74, %p75
      %p77 = scmp.ne.s32.totalorder %s66, %s69
      %p78 = scmp.eq.s32.totalorder %s19, 3
      %p79 = por %p77, %p78
      %p80 = scmp.ne.s32.totalorder %s69, %s70
      %p81 = scmp.eq.s32.totalorder %s19, 0
      %p82 = por %p80, %p81
      %p83 = scmp.ne.s32.totalorder %s69, %s70
      %p84 = scmp.eq.s32.totalorder %s20, 3
      %p85 = por %p83, %p84
      %p87 = scmp.ne.s32.totalorder %s70, %s86
      %p88 = scmp.eq.s32.totalorder %s20, 0
      %p89 = por %p87, %p88
      %s90 = ssub.s32 %s21, %s33
      %s91 = ssub.s32 %s22, %s29
      %s92 = sor.u32 %s90, %s91
      %p93 = scmp.eq.s32.totalorder %s92, 0
      %s95 = sadd.s32 %s94, 1
      %s96 = scalar_select %p93, %s94, %s95
      %p99 = pneg %p93
      %p100 = scmp.eq.s32.totalorder %s14, 3
      %p101 = por %p99, %p100
      %p102 = scmp.ne.s32.totalorder %s94, %s97
      %p103 = scmp.eq.s32.totalorder %s14, 0
      %p104 = por %p102, %p103
      %p105 = scmp.ne.s32.totalorder %s94, %s97
      %p106 = scmp.eq.s32.totalorder %s19, 3
      %p107 = por %p105, %p106
      %p108 = scmp.ne.s32.totalorder %s97, %s98
      %p109 = scmp.eq.s32.totalorder %s19, 0
      %p110 = por %p108, %p109
      %p111 = scmp.ne.s32.totalorder %s97, %s98
      %p112 = scmp.eq.s32.totalorder %s20, 3
      %p113 = por %p111, %p112
      %p115 = scmp.ne.s32.totalorder %s98, %s114
      %p116 = scmp.eq.s32.totalorder %s20, 0
      %p117 = por %p115, %p116
      %s119 = sadd.s32 %s118, 1
      %p122 = scmp.eq.s32.totalorder %s14, 3
      %p123 = scmp.ne.s32.totalorder %s118, %s120
      %p124 = scmp.eq.s32.totalorder %s14, 0
      %p125 = por %p123, %p124
      %p126 = scmp.ne.s32.totalorder %s118, %s120
      %p127 = scmp.eq.s32.totalorder %s19, 3
      %p128 = por %p126, %p127
      %p129 = scmp.ne.s32.totalorder %s120, %s121
      %p130 = scmp.eq.s32.totalorder %s19, 0
      %p131 = por %p129, %p130
      %p132 = scmp.ne.s32.totalorder %s120, %s121
      %p133 = scmp.eq.s32.totalorder %s20, 3
      %p134 = por %p132, %p133
      %p136 = scmp.ne.s32.totalorder %s121, %s135
      %p137 = scmp.eq.s32.totalorder %s20, 0
      %p138 = por %p136, %p137
      %s140 = sadd.s32 %s139, 1
      %p143 = scmp.eq.s32.totalorder %s14, 3
      %p144 = scmp.ne.s32.totalorder %s139, %s141
      %p145 = scmp.eq.s32.totalorder %s14, 0
      %p146 = por %p144, %p145
      %p147 = scmp.ne.s32.totalorder %s139, %s141
      %p148 = scmp.eq.s32.totalorder %s19, 3
      %p149 = por %p147, %p148
      %p150 = scmp.ne.s32.totalorder %s141, %s142
      %p151 = scmp.eq.s32.totalorder %s19, 0
      %p152 = por %p150, %p151
      %p153 = scmp.ne.s32.totalorder %s141, %s142
      %p154 = scmp.eq.s32.totalorder %s20, 3
      %p155 = por %p153, %p154
      %p157 = scmp.ne.s32.totalorder %s142, %s156
      %p158 = scmp.eq.s32.totalorder %s20, 0
      %p159 = por %p157, %p158
      %s160 = ssub.s32 %s21, %s33
      %s161 = ssub.s32 %s22, %s29
      %s162 = sor.u32 %s160, %s161
      %p163 = scmp.eq.s32.totalorder %s162, 0
      %s165 = sadd.s32 %s164, 1
      %s166 = scalar_select %p163, %s164, %s165
      %p169 = pneg %p163
      %p170 = scmp.eq.s32.totalorder %s14, 3
      %p171 = por %p169, %p170
      %p172 = scmp.ne.s32.totalorder %s164, %s167
      %p173 = scmp.eq.s32.totalorder %s14, 0
      %p174 = por %p172, %p173
      %p175 = scmp.ne.s32.totalorder %s164, %s167
      %p176 = scmp.eq.s32.totalorder %s19, 3
      %p177 = por %p175, %p176
      %p178 = scmp.ne.s32.totalorder %s167, %s168
      %p179 = scmp.eq.s32.totalorder %s19, 0
      %p180 = por %p178, %p179
      %p181 = scmp.ne.s32.totalorder %s167, %s168
      %p182 = scmp.eq.s32.totalorder %s20, 3
      %p183 = por %p181, %p182
      %p185 = scmp.ne.s32.totalorder %s168, %s184
      %p186 = scmp.eq.s32.totalorder %s20, 0
      %p187 = por %p185, %p186
      %p188 = scmp.le.s32.totalorder 1, %s14
      %p189 = scmp.lt.s32.totalorder %s14, 5
      %p190 = pnand %p188, %p189
      %p191 = pneg %p190
      // Predicated region
      $region9: #{tpu_custom_call.1} parent=5 // pred_check
        _
      $region10: #{tpu_custom_call.1} parent=5 // pred_check_branch
        %193 = sbr.rel (%p190) target = $region12
      $region11: #{tpu_custom_call.1} parent=5 // pred_region
        %s194 = ssub.s32 %s14, 1
        // Predicated region
        $region13: #{tpu_custom_call.1} parent=11 // pred_check
          %p195 = pneg %p131
        $region14: #{tpu_custom_call.1} parent=11 // pred_check_branch
          %197 = sbr.rel (%p195) target = $region16
        $region15: #{tpu_custom_call.1} parent=11 // pred_region
          _
        $region16: #{tpu_custom_call.1} parent=11 // pred_fallthru
          _
        // Predicated region
        $region17: #{tpu_custom_call.1} parent=11 // pred_check
          %p198 = pneg %p152
        $region18: #{tpu_custom_call.1} parent=11 // pred_check_branch
          %200 = sbr.rel (%p198) target = $region20
        $region19: #{tpu_custom_call.1} parent=11 // pred_region
          _
        $region20: #{tpu_custom_call.1} parent=11 // pred_fallthru
          _
      $region12: #{tpu_custom_call.1} parent=5 // pred_fallthru
        _
      %p201 = scmp.lt.s32.totalorder %s14, 4
      // Predicated region
      $region21: #{tpu_custom_call.1} parent=5 // pred_check
        %p202 = pneg %p201
      $region22: #{tpu_custom_call.1} parent=5 // pred_check_branch
        %204 = sbr.rel (%p202) target = $region24
      $region23: #{tpu_custom_call.1} parent=5 // pred_region
        // Predicated region
        $region25: #{tpu_custom_call.1} parent=23 // pred_check
          %p205 = pneg %p48
        $region26: #{tpu_custom_call.1} parent=23 // pred_check_branch
          %207 = sbr.rel (%p205) target = $region28
        $region27: #{tpu_custom_call.1} parent=23 // pred_region
          %s208 = smul.u32 8, %s22
          %p209 = scmp.lt.s32.totalorder %s21, 1
          %s210 = scalar_select %p209, %s21, 1
          %p211 = scmp.lt.s32.totalorder %s208, 15
          %s212 = scalar_select %p211, %s208, 15
          %s213 = smul.addr %s212, 3
          %s214 = smul.addr %s210, 48
          %s215 = sadd.s32 %s213, %s214
          %s216 = smul.addr %s215, 8
          %s217 = scalar_lea.vmem %s0, %s216
          %s218 = smul.u32 8, %s22
        $region28: #{tpu_custom_call.1} parent=23 // pred_fallthru
          _
        // Predicated region
        $region29: #{tpu_custom_call.1} parent=23 // pred_check
          %p219 = pneg %p76
        $region30: #{tpu_custom_call.1} parent=23 // pred_check_branch
          %221 = sbr.rel (%p219) target = $region32
        $region31: #{tpu_custom_call.1} parent=23 // pred_region
          %s222 = smul.u32 8, %s22
          %p223 = scmp.lt.s32.totalorder %s21, 1
          %s224 = scalar_select %p223, %s21, 1
          %p225 = scmp.lt.s32.totalorder %s222, 15
          %s226 = scalar_select %p225, %s222, 15
          %s227 = smul.addr %s226, 3
          %s228 = smul.addr %s224, 48
          %s229 = sadd.s32 %s227, %s228
          %s230 = smul.addr %s229, 8
          %s231 = scalar_lea.vmem %s1, %s230
          %s232 = smul.u32 8, %s22
        $region32: #{tpu_custom_call.1} parent=23 // pred_fallthru
          _
        // Predicated region
        $region33: #{tpu_custom_call.1} parent=23 // pred_check
          %p233 = pneg %p104
        $region34: #{tpu_custom_call.1} parent=23 // pred_check_branch
          %235 = sbr.rel (%p233) target = $region36
        $region35: #{tpu_custom_call.1} parent=23 // pred_region
          %s236 = smul.u32 8, %s22
          %p237 = scmp.lt.s32.totalorder %s21, 1
          %s238 = scalar_select %p237, %s21, 1
          %p239 = scmp.lt.s32.totalorder %s236, 15
          %s240 = scalar_select %p239, %s236, 15
          %s241 = smul.addr %s240, 3
          %s242 = smul.addr %s238, 48
          %s243 = sadd.s32 %s241, %s242
          %s244 = smul.addr %s243, 8
          %s245 = scalar_lea.vmem %s2, %s244
          %s246 = smul.u32 8, %s22
        $region36: #{tpu_custom_call.1} parent=23 // pred_fallthru
          _
      $region24: #{tpu_custom_call.1} parent=5 // pred_fallthru
        _
      %p247 = scmp.le.s32.totalorder 1, %s14
      %p248 = scmp.lt.s32.totalorder %s14, 5
      %p249 = pnand %p247, %p248
      %p250 = pneg %p249
      // Predicated region
      $region37: #{tpu_custom_call.1} parent=5 // pred_check
        _
      $region38: #{tpu_custom_call.1} parent=5 // pred_check_branch
        %252 = sbr.rel (%p249) target = $region40
      $region39: #{tpu_custom_call.1} parent=5 // pred_region
        %s253 = ssub.s32 %s14, 1
        %s254 = smul.u32 8, %s24
        %p255 = scmp.lt.s32.totalorder %s23, 1
        %s256 = scalar_select %p255, %s23, 1
        %p257 = scmp.lt.s32.totalorder %s254, 15
        %s258 = scalar_select %p257, %s254, 15
        %s259 = smul.addr %s258, 3
        %s260 = smul.addr %s256, 48
        %s261 = sadd.s32 %s259, %s260
        %s262 = smul.addr %s261, 8
        %s263 = scalar_lea.vmem %s0, %s262
        %p264 = pneg %p54
        %p265 = pneg %p51
        %s266 = smul.u32 8, %s24
        %p267 = scmp.lt.s32.totalorder %s23, 1
        %s268 = scalar_select %p267, %s23, 1
        %p269 = scmp.lt.s32.totalorder %s266, 15
        %s270 = scalar_select %p269, %s266, 15
        %s271 = smul.addr %s270, 3
        %s272 = smul.addr %s268, 48
        %s273 = sadd.s32 %s271, %s272
        %s274 = smul.addr %s273, 8
        %s275 = scalar_lea.vmem %s1, %s274
        %p276 = pneg %p82
        %p277 = pneg %p79
        %s278 = smul.u32 8, %s24
        %p279 = scmp.lt.s32.totalorder %s23, 1
        %s280 = scalar_select %p279, %s23, 1
        %p281 = scmp.lt.s32.totalorder %s278, 15
        %s282 = scalar_select %p281, %s278, 15
        %s283 = smul.addr %s282, 3
        %s284 = smul.addr %s280, 48
        %s285 = sadd.s32 %s283, %s284
        %s286 = smul.addr %s285, 8
        %s287 = scalar_lea.vmem %s2, %s286
        %p288 = pneg %p110
        %p289 = pneg %p107
        %p290 = pneg %p131
        %p291 = pneg %p128
        %p292 = pneg %p152
        %p293 = pneg %p149
        %p294 = pneg %p180
        %p295 = pneg %p177
        %s296 = sand.u32 %s167, 1
        %s297 = scalar_lea.sflag [#allocation3], %s296
        %s298 = sand.u32 %s167, 1
        %s299 = smul.addr %s298, 128
        %s300 = scalar_lea.vmem [#allocation2], %s299
        %s301 = smul.u32 8, %s24
        %p302 = scmp.lt.s32.totalorder %s23, 1
        %s303 = scalar_select %p302, %s23, 1
        %p304 = scmp.lt.s32.totalorder %s301, 15
        %s305 = scalar_select %p304, %s301, 15
        %s306 = smul.addr %s305, 3
        %s307 = smul.addr %s303, 48
        %s308 = sadd.s32 %s306, %s307
        %s309 = smul.addr %s308, 8
        %s310 = scalar_lea.vmem %s0, %s309
        %s311 = smul.u32 8, %s24
        %s312 = smul.u32 8, %s24
        %p313 = scmp.lt.s32.totalorder %s23, 1
        %s314 = scalar_select %p313, %s23, 1
        %p315 = scmp.lt.s32.totalorder %s312, 15
        %s316 = scalar_select %p315, %s312, 15
        %s317 = smul.addr %s316, 3
        %s318 = smul.addr %s314, 48
        %s319 = sadd.s32 %s317, %s318
        %s320 = smul.addr %s319, 8
        %s321 = scalar_lea.vmem %s1, %s320
        %s322 = smul.u32 8, %s24
        %s323 = smul.u32 8, %s24
        %p324 = scmp.lt.s32.totalorder %s23, 1
        %s325 = scalar_select %p324, %s23, 1
        %p326 = scmp.lt.s32.totalorder %s323, 15
        %s327 = scalar_select %p326, %s323, 15
        %s328 = smul.addr %s327, 3
        %s329 = smul.addr %s325, 48
        %s330 = sadd.s32 %s328, %s329
        %s331 = smul.addr %s330, 8
        %s332 = scalar_lea.vmem %s2, %s331
        %s333 = smul.u32 8, %s24
        %s334 = smul.u32 8, %s24
        %v335 = vld [vmem:[%s310] sm:$0xff]
        %v336 = vld [vmem:[%s310 + $0x8] sm:$0xff]
        %v337 = vld [vmem:[%s310 + $0x18] sm:$0xff]
        %v338 = vld [vmem:[%s310 + $0x20] sm:$0xff]
        %v339 = vld [vmem:[%s310 + $0x30] sm:$0xff]
        %v340 = vld [vmem:[%s310 + $0x38] sm:$0xff]
        %v341 = vld [vmem:[%s310 + $0x48] sm:$0xff]
        %v342 = vld [vmem:[%s310 + $0x50] sm:$0xff]
        %v343 = vld [vmem:[%s310 + $0x60] sm:$0xff]
        %v344 = vld [vmem:[%s310 + $0x68] sm:$0xff]
        %v345 = vld [vmem:[%s310 + $0x78] sm:$0xff]
        %v346 = vld [vmem:[%s310 + $0x80] sm:$0xff]
        %v347 = vld [vmem:[%s310 + $0x90] sm:$0xff]
        %v348 = vld [vmem:[%s310 + $0x98] sm:$0xff]
        %v349 = vld [vmem:[%s310 + $0xa8] sm:$0xff]
        %v350 = vld [vmem:[%s310 + $0xb0] sm:$0xff]
        %v351 = vld [vmem:[%s3] sm:$0xff]
        %v352 = vld [vmem:[%s3 + $0x8] sm:$0xff]
        %v353 = vld [vmem:[%s3 + $0x10] sm:$0xff]
        %v354 = vld [vmem:[%s3 + $0x18] sm:$0xff]
        %v355 = vld [vmem:[%s3 + $0x20] sm:$0xff]
        %v356 = vld [vmem:[%s3 + $0x28] sm:$0xff]
        %v357 = vld [vmem:[%s3 + $0x30] sm:$0xff]
        %v358 = vld [vmem:[%s3 + $0x38] sm:$0xff]
        %v359 = vld [vmem:[%s3 + $0x40] sm:$0xff]
        %v360 = vld [vmem:[%s3 + $0x48] sm:$0xff]
        %v361 = vld [vmem:[%s3 + $0x50] sm:$0xff]
        %v362 = vld [vmem:[%s3 + $0x58] sm:$0xff]
        %v363 = vld [vmem:[%s3 + $0x60] sm:$0xff]
        %v364 = vld [vmem:[%s3 + $0x68] sm:$0xff]
        %v365 = vld [vmem:[%s3 + $0x70] sm:$0xff]
        %v366 = vld [vmem:[%s3 + $0x78] sm:$0xff]
        %v367 = vld [vmem:[%s310 + $0x1] sm:$0xff]
        %v368 = vld [vmem:[%s310 + $0x9] sm:$0xff]
        %v369 = vld [vmem:[%s310 + $0x19] sm:$0xff]
        %v370 = vld [vmem:[%s310 + $0x21] sm:$0xff]
        %v371 = vld [vmem:[%s310 + $0x31] sm:$0xff]
        %v372 = vld [vmem:[%s310 + $0x39] sm:$0xff]
        %v373 = vld [vmem:[%s310 + $0x49] sm:$0xff]
        %v374 = vld [vmem:[%s310 + $0x51] sm:$0xff]
        %v375 = vld [vmem:[%s310 + $0x61] sm:$0xff]
        %v376 = vld [vmem:[%s310 + $0x69] sm:$0xff]
        %v377 = vld [vmem:[%s310 + $0x79] sm:$0xff]
        %v378 = vld [vmem:[%s310 + $0x81] sm:$0xff]
        %v379 = vld [vmem:[%s310 + $0x91] sm:$0xff]
        %v380 = vld [vmem:[%s310 + $0x99] sm:$0xff]
        %v381 = vld [vmem:[%s310 + $0xa9] sm:$0xff]
        %v382 = vld [vmem:[%s310 + $0xb1] sm:$0xff]
        %s383 = scalar_lea.vmem %s3, 128
        %v384 = vld [vmem:[%s383] sm:$0xff]
        %v385 = vld [vmem:[%s383 + $0x8] sm:$0xff]
        %v386 = vld [vmem:[%s383 + $0x10] sm:$0xff]
        %v387 = vld [vmem:[%s383 + $0x18] sm:$0xff]
        %v388 = vld [vmem:[%s383 + $0x20] sm:$0xff]
        %v389 = vld [vmem:[%s383 + $0x28] sm:$0xff]
        %v390 = vld [vmem:[%s383 + $0x30] sm:$0xff]
        %v391 = vld [vmem:[%s383 + $0x38] sm:$0xff]
        %v392 = vld [vmem:[%s383 + $0x40] sm:$0xff]
        %v393 = vld [vmem:[%s383 + $0x48] sm:$0xff]
        %v394 = vld [vmem:[%s383 + $0x50] sm:$0xff]
        %v395 = vld [vmem:[%s383 + $0x58] sm:$0xff]
        %v396 = vld [vmem:[%s383 + $0x60] sm:$0xff]
        %v397 = vld [vmem:[%s383 + $0x68] sm:$0xff]
        %v398 = vld [vmem:[%s383 + $0x70] sm:$0xff]
        %v399 = vld [vmem:[%s383 + $0x78] sm:$0xff]
        %400 = vmatprep.subr.mxu0 0.0
        %401 = vmatpush1.msra.mxu0 %v384
        %402 = vmatprep.subr.mxu0 0.0
        %403 = vmatpush1.msra.mxu0 %v385
        %404 = vmatprep.subr.mxu0 0.0
        %405 = vmatpush1.msra.mxu0 %v386
        %406 = vmatprep.subr.mxu0 0.0
        %407 = vmatpush1.msra.mxu0 %v387
        %408 = vmatprep.subr.mxu0 0.0
        %409 = vmatpush1.msra.mxu0 %v388
        %410 = vmatprep.subr.mxu0 0.0
        %411 = vmatpush1.msra.mxu0 %v389
        %412 = vmatprep.subr.mxu0 0.0
        %413 = vmatpush1.msra.mxu0 %v390
        %414 = vmatprep.subr.mxu0 0.0
        %415 = vmatpush1.msra.mxu0 %v391
        %416 = vmatprep.subr.mxu0 0.0
        %417 = vmatpush1.msra.mxu0 %v392
        %418 = vmatprep.subr.mxu0 0.0
        %419 = vmatpush1.msra.mxu0 %v393
        %420 = vmatprep.subr.mxu0 0.0
        %421 = vmatpush1.msra.mxu0 %v394
        %422 = vmatprep.subr.mxu0 0.0
        %423 = vmatpush1.msra.mxu0 %v395
        %424 = vmatprep.subr.mxu0 0.0
        %425 = vmatpush1.msra.mxu0 %v396
        %426 = vmatprep.subr.mxu0 0.0
        %427 = vmatpush1.msra.mxu0 %v397
        %428 = vmatprep.subr.mxu0 0.0
        %429 = vmatpush1.msra.mxu0 %v398
        %430 = vmatprep.subr.mxu0 0.0
        %431 = vmatpush1.msra.mxu0 %v399
        %432 = vmatprep.subr.mxu0 0.0
        %433 = vmatpush1.msra.mxu0 0.0
        %434 = vmatprep.subr.mxu0 0.0
        %435 = vmatpush1.msra.mxu0 0.0
        %436 = vmatprep.subr.mxu0 0.0
        %437 = vmatpush1.msra.mxu0 0.0
        %438 = vmatprep.subr.mxu0 0.0
        %439 = vmatpush1.msra.mxu0 0.0
        %440 = vmatprep.subr.mxu0 0.0
        %441 = vmatpush1.msra.mxu0 0.0
        %442 = vmatprep.subr.mxu0 0.0
        %443 = vmatpush1.msra.mxu0 0.0
        %444 = vmatprep.subr.mxu0 0.0
        %445 = vmatpush1.msra.mxu0 0.0
        %446 = vmatprep.subr.mxu0 0.0
        %447 = vmatpush1.msra.mxu0 0.0
        %448 = vmatprep.subr.mxu0 0.0
        %449 = vmatpush1.msra.mxu0 0.0
        %450 = vmatprep.subr.mxu0 0.0
        %451 = vmatpush1.msra.mxu0 0.0
        %452 = vmatprep.subr.mxu0 0.0
        %453 = vmatpush1.msra.mxu0 0.0
        %454 = vmatprep.subr.mxu0 0.0
        %455 = vmatpush1.msra.mxu0 0.0
        %456 = vmatprep.subr.mxu0 0.0
        %457 = vmatpush1.msra.mxu0 0.0
        %458 = vmatprep.subr.mxu0 0.0
        %459 = vmatpush1.msra.mxu0 0.0
        %460 = vmatprep.subr.mxu0 0.0
        %461 = vmatpush1.msra.mxu0 0.0
        %462 = vmatprep.subr.mxu0 0.0
        %463 = vmatpush1.msra.mxu0 0.0
        %464 = vmatprep.mubr.f32.mxu0 0.0
        %465 = vmatmul.mubr.f32.gmra.mrb[0].mxu0 %v367
        %v466 = vpop.f32.mrb[0].mxu0
        %v467 = vadd.f32 0.0, %v466
        %v468 = vpop.f32.mrb[0].mxu0
        %469 = vmatprep.mubr.f32.mxu0 0.0
        %470 = vmatmul.mubr.f32.gmra.mrb[0].mxu0 %v368
        %v471 = vpop.f32.mrb[0].mxu0
        %v472 = vadd.f32 0.0, %v471
        %v473 = vpop.f32.mrb[0].mxu0
        %474 = vmatprep.mubr.f32.mxu0 0.0
        %475 = vmatmul.mubr.f32.gmra.mrb[0].mxu0 %v369
        %v476 = vpop.f32.mrb[0].mxu0
        %v477 = vadd.f32 0.0, %v476
        %v478 = vpop.f32.mrb[0].mxu0
        %479 = vmatprep.mubr.f32.mxu0 0.0
        %480 = vmatmul.mubr.f32.gmra.mrb[0].mxu0 %v370
        %v481 = vpop.f32.mrb[0].mxu0
        %v482 = vadd.f32 0.0, %v481
        %v483 = vpop.f32.mrb[0].mxu0
        %484 = vmatprep.mubr.f32.mxu0 0.0
        %485 = vmatmul.mubr.f32.gmra.mrb[0].mxu0 %v371
        %v486 = vpop.f32.mrb[0].mxu0
        %v487 = vadd.f32 0.0, %v486
        %v488 = vpop.f32.mrb[0].mxu0
        %489 = vmatprep.mubr.f32.mxu0 0.0
        %490 = vmatmul.mubr.f32.gmra.mrb[0].mxu0 %v372
        %v491 = vpop.f32.mrb[0].mxu0
        %v492 = vadd.f32 0.0, %v491
        %v493 = vpop.f32.mrb[0].mxu0
        %494 = vmatprep.mubr.f32.mxu0 0.0
        %495 = vmatmul.mubr.f32.gmra.mrb[0].mxu0 %v373
        %v496 = vpop.f32.mrb[0].mxu0
        %v497 = vadd.f32 0.0, %v496
        %v498 = vpop.f32.mrb[0].mxu0
        %499 = vmatprep.mubr.f32.mxu0 0.0
        %500 = vmatmul.mubr.f32.gmra.mrb[0].mxu0 %v374
        %v501 = vpop.f32.mrb[0].mxu0
        %v502 = vadd.f32 0.0, %v501
        %v503 = vpop.f32.mrb[0].mxu0
        %504 = vmatprep.mubr.f32.mxu0 0.0
        %505 = vmatmul.mubr.f32.gmra.mrb[0].mxu0 %v375
        %v506 = vpop.f32.mrb[0].mxu0
        %v507 = vadd.f32 0.0, %v506
        %v508 = vpop.f32.mrb[0].mxu0
        %509 = vmatprep.mubr.f32.mxu0 0.0
        %510 = vmatmul.mubr.f32.gmra.mrb[0].mxu0 %v376
        %v511 = vpop.f32.mrb[0].mxu0
        %v512 = vadd.f32 0.0, %v511
        %v513 = vpop.f32.mrb[0].mxu0
        %514 = vmatprep.mubr.f32.mxu0 0.0
        %515 = vmatmul.mubr.f32.gmra.mrb[0].mxu0 %v377
        %v516 = vpop.f32.mrb[0].mxu0
        %v517 = vadd.f32 0.0, %v516
        %v518 = vpop.f32.mrb[0].mxu0
        %519 = vmatprep.mubr.f32.mxu0 0.0
        %520 = vmatmul.mubr.f32.gmra.mrb[0].mxu0 %v378
        %v521 = vpop.f32.mrb[0].mxu0
        %v522 = vadd.f32 0.0, %v521
        %v523 = vpop.f32.mrb[0].mxu0
        %524 = vmatprep.mubr.f32.mxu0 0.0
        %525 = vmatmul.mubr.f32.gmra.mrb[0].mxu0 %v379
        %v526 = vpop.f32.mrb[0].mxu0
        %v527 = vadd.f32 0.0, %v526
        %v528 = vpop.f32.mrb[0].mxu0
        %529 = vmatprep.mubr.f32.mxu0 0.0
        %530 = vmatmul.mubr.f32.gmra.mrb[0].mxu0 %v380
        %v531 = vpop.f32.mrb[0].mxu0
        %v532 = vadd.f32 0.0, %v531
        %v533 = vpop.f32.mrb[0].mxu0
        %534 = vmatprep.mubr.f32.mxu0 0.0
        %535 = vmatmul.mubr.f32.gmra.mrb[0].mxu0 %v381
        %v536 = vpop.f32.mrb[0].mxu0
        %v537 = vadd.f32 0.0, %v536
        %v538 = vpop.f32.mrb[0].mxu0
        %539 = vmatprep.mubr.f32.mxu0 0.0
        %540 = vmatmul.mubr.f32.gmra.mrb[0].mxu0 %v382
        %v541 = vpop.f32.mrb[0].mxu0
        %v542 = vadd.f32 0.0, %v541
        %v543 = vpop.f32.mrb[0].mxu0
        %544 = vdwg.mxu0
        %545 = vmatprep.subr.mxu0 0.0
        %546 = vmatpush1.msra.mxu0 %v351
        %547 = vmatprep.subr.mxu0 0.0
        %548 = vmatpush1.msra.mxu0 %v352
        %549 = vmatprep.subr.mxu0 0.0
        %550 = vmatpush1.msra.mxu0 %v353
        %551 = vmatprep.subr.mxu0 0.0
        %552 = vmatpush1.msra.mxu0 %v354
        %553 = vmatprep.subr.mxu0 0.0
        %554 = vmatpush1.msra.mxu0 %v355
        %555 = vmatprep.subr.mxu0 0.0
        %556 = vmatpush1.msra.mxu0 %v356
        %557 = vmatprep.subr.mxu0 0.0
        %558 = vmatpush1.msra.mxu0 %v357
        %559 = vmatprep.subr.mxu0 0.0
        %560 = vmatpush1.msra.mxu0 %v358
        %561 = vmatprep.subr.mxu0 0.0
        %562 = vmatpush1.msra.mxu0 %v359
        %563 = vmatprep.subr.mxu0 0.0
        %564 = vmatpush1.msra.mxu0 %v360
        %565 = vmatprep.subr.mxu0 0.0
        %566 = vmatpush1.msra.mxu0 %v361
        %567 = vmatprep.subr.mxu0 0.0
        %568 = vmatpush1.msra.mxu0 %v362
        %569 = vmatprep.subr.mxu0 0.0
        %570 = vmatpush1.msra.mxu0 %v363
        %571 = vmatprep.subr.mxu0 0.0
        %572 = vmatpush1.msra.mxu0 %v364
        %573 = vmatprep.subr.mxu0 0.0
        %574 = vmatpush1.msra.mxu0 %v365
        %575 = vmatprep.subr.mxu0 0.0
        %576 = vmatpush1.msra.mxu0 %v366
        %577 = vmatprep.subr.mxu0 0.0
        %578 = vmatpush1.msra.mxu0 0.0
        %579 = vmatprep.subr.mxu0 0.0
        %580 = vmatpush1.msra.mxu0 0.0
        %581 = vmatprep.subr.mxu0 0.0
        %582 = vmatpush1.msra.mxu0 0.0
        %583 = vmatprep.subr.mxu0 0.0
        %584 = vmatpush1.msra.mxu0 0.0
        %585 = vmatprep.subr.mxu0 0.0
        %586 = vmatpush1.msra.mxu0 0.0
        %587 = vmatprep.subr.mxu0 0.0
        %588 = vmatpush1.msra.mxu0 0.0
        %589 = vmatprep.subr.mxu0 0.0
        %590 = vmatpush1.msra.mxu0 0.0
        %591 = vmatprep.subr.mxu0 0.0
        %592 = vmatpush1.msra.mxu0 0.0
        %593 = vmatprep.subr.mxu0 0.0
        %594 = vmatpush1.msra.mxu0 0.0
        %595 = vmatprep.subr.mxu0 0.0
        %596 = vmatpush1.msra.mxu0 0.0
        %597 = vmatprep.subr.mxu0 0.0
        %598 = vmatpush1.msra.mxu0 0.0
        %599 = vmatprep.subr.mxu0 0.0
        %600 = vmatpush1.msra.mxu0 0.0
        %601 = vmatprep.subr.mxu0 0.0
        %602 = vmatpush1.msra.mxu0 0.0
        %603 = vmatprep.subr.mxu0 0.0
        %604 = vmatpush1.msra.mxu0 0.0
        %605 = vmatprep.subr.mxu0 0.0
        %606 = vmatpush1.msra.mxu0 0.0
        %607 = vmatprep.subr.mxu0 0.0
        %608 = vmatpush1.msra.mxu0 0.0
        %609 = vmatprep.mubr.f32.mxu0 0.0
        %610 = vmatmul.mubr.f32.gmra.mrb[0].mxu0 %v335
        %v611 = vpop.f32.mrb[0].mxu0
        %v612 = vadd.f32 %v467, %v611
        %v613 = vpop.f32.mrb[0].mxu0
        %614 = vmatprep.mubr.f32.mxu0 0.0
        %615 = vmatmul.mubr.f32.gmra.mrb[0].mxu0 %v336
        %v616 = vpop.f32.mrb[0].mxu0
        %v617 = vadd.f32 %v472, %v616
        %v618 = vpop.f32.mrb[0].mxu0
        %619 = vmatprep.mubr.f32.mxu0 0.0
        %620 = vmatmul.mubr.f32.gmra.mrb[0].mxu0 %v337
        %v621 = vpop.f32.mrb[0].mxu0
        %v622 = vadd.f32 %v477, %v621
        %v623 = vpop.f32.mrb[0].mxu0
        %624 = vmatprep.mubr.f32.mxu0 0.0
        %625 = vmatmul.mubr.f32.gmra.mrb[0].mxu0 %v338
        %v626 = vpop.f32.mrb[0].mxu0
        %v627 = vadd.f32 %v482, %v626
        %v628 = vpop.f32.mrb[0].mxu0
        %629 = vmatprep.mubr.f32.mxu0 0.0
        %630 = vmatmul.mubr.f32.gmra.mrb[0].mxu0 %v339
        %v631 = vpop.f32.mrb[0].mxu0
        %v632 = vadd.f32 %v487, %v631
        %v633 = vpop.f32.mrb[0].mxu0
        %634 = vmatprep.mubr.f32.mxu0 0.0
        %635 = vmatmul.mubr.f32.gmra.mrb[0].mxu0 %v340
        %v636 = vpop.f32.mrb[0].mxu0
        %v637 = vadd.f32 %v492, %v636
        %v638 = vpop.f32.mrb[0].mxu0
        %639 = vmatprep.mubr.f32.mxu0 0.0
        %640 = vmatmul.mubr.f32.gmra.mrb[0].mxu0 %v341
        %v641 = vpop.f32.mrb[0].mxu0
        %v642 = vadd.f32 %v497, %v641
        %v643 = vpop.f32.mrb[0].mxu0
        %644 = vmatprep.mubr.f32.mxu0 0.0
        %645 = vmatmul.mubr.f32.gmra.mrb[0].mxu0 %v342
        %v646 = vpop.f32.mrb[0].mxu0
        %v647 = vadd.f32 %v502, %v646
        %v648 = vpop.f32.mrb[0].mxu0
        %649 = vmatprep.mubr.f32.mxu0 0.0
        %650 = vmatmul.mubr.f32.gmra.mrb[0].mxu0 %v343
        %v651 = vpop.f32.mrb[0].mxu0
        %v652 = vadd.f32 %v507, %v651
        %v653 = vpop.f32.mrb[0].mxu0
        %654 = vmatprep.mubr.f32.mxu0 0.0
        %655 = vmatmul.mubr.f32.gmra.mrb[0].mxu0 %v344
        %v656 = vpop.f32.mrb[0].mxu0
        %v657 = vadd.f32 %v512, %v656
        %v658 = vpop.f32.mrb[0].mxu0
        %659 = vmatprep.mubr.f32.mxu0 0.0
        %660 = vmatmul.mubr.f32.gmra.mrb[0].mxu0 %v345
        %v661 = vpop.f32.mrb[0].mxu0
        %v662 = vadd.f32 %v517, %v661
        %v663 = vpop.f32.mrb[0].mxu0
        %664 = vmatprep.mubr.f32.mxu0 0.0
        %665 = vmatmul.mubr.f32.gmra.mrb[0].mxu0 %v346
        %v666 = vpop.f32.mrb[0].mxu0
        %v667 = vadd.f32 %v522, %v666
        %v668 = vpop.f32.mrb[0].mxu0
        %669 = vmatprep.mubr.f32.mxu0 0.0
        %670 = vmatmul.mubr.f32.gmra.mrb[0].mxu0 %v347
        %v671 = vpop.f32.mrb[0].mxu0
        %v672 = vadd.f32 %v527, %v671
        %v673 = vpop.f32.mrb[0].mxu0
        %674 = vmatprep.mubr.f32.mxu0 0.0
        %675 = vmatmul.mubr.f32.gmra.mrb[0].mxu0 %v348
        %v676 = vpop.f32.mrb[0].mxu0
        %v677 = vadd.f32 %v532, %v676
        %v678 = vpop.f32.mrb[0].mxu0
        %679 = vmatprep.mubr.f32.mxu0 0.0
        %680 = vmatmul.mubr.f32.gmra.mrb[0].mxu0 %v349
        %v681 = vpop.f32.mrb[0].mxu0
        %v682 = vadd.f32 %v537, %v681
        %v683 = vpop.f32.mrb[0].mxu0
        %684 = vmatprep.mubr.f32.mxu0 0.0
        %685 = vmatmul.mubr.f32.gmra.mrb[0].mxu0 %v350
        %v686 = vpop.f32.mrb[0].mxu0
        %v687 = vadd.f32 %v542, %v686
        %v688 = vpop.f32.mrb[0].mxu0
        %689 = vdwg.mxu0
        %v690 = vld [vmem:[%s310 + $0x2] sm:$0xff]
        %v691 = vld [vmem:[%s310 + $0xa] sm:$0xff]
        %v692 = vld [vmem:[%s310 + $0x1a] sm:$0xff]
        %v693 = vld [vmem:[%s310 + $0x22] sm:$0xff]
        %v694 = vld [vmem:[%s310 + $0x32] sm:$0xff]
        %v695 = vld [vmem:[%s310 + $0x3a] sm:$0xff]
        %v696 = vld [vmem:[%s310 + $0x4a] sm:$0xff]
        %v697 = vld [vmem:[%s310 + $0x52] sm:$0xff]
        %v698 = vld [vmem:[%s310 + $0x62] sm:$0xff]
        %v699 = vld [vmem:[%s310 + $0x6a] sm:$0xff]
        %v700 = vld [vmem:[%s310 + $0x7a] sm:$0xff]
        %v701 = vld [vmem:[%s310 + $0x82] sm:$0xff]
        %v702 = vld [vmem:[%s310 + $0x92] sm:$0xff]
        %v703 = vld [vmem:[%s310 + $0x9a] sm:$0xff]
        %v704 = vld [vmem:[%s310 + $0xaa] sm:$0xff]
        %v705 = vld [vmem:[%s310 + $0xb2] sm:$0xff]
        %s706 = scalar_lea.vmem %s3, 256
        %v707 = vld [vmem:[%s706] sm:$0xff]
        %v708 = vld [vmem:[%s706 + $0x8] sm:$0xff]
        %v709 = vld [vmem:[%s706 + $0x10] sm:$0xff]
        %v710 = vld [vmem:[%s706 + $0x18] sm:$0xff]
        %v711 = vld [vmem:[%s706 + $0x20] sm:$0xff]
        %v712 = vld [vmem:[%s706 + $0x28] sm:$0xff]
        %v713 = vld [vmem:[%s706 + $0x30] sm:$0xff]
        %v714 = vld [vmem:[%s706 + $0x38] sm:$0xff]
        %v715 = vld [vmem:[%s706 + $0x40] sm:$0xff]
        %v716 = vld [vmem:[%s706 + $0x48] sm:$0xff]
        %v717 = vld [vmem:[%s706 + $0x50] sm:$0xff]
        %v718 = vld [vmem:[%s706 + $0x58] sm:$0xff]
        %v719 = vld [vmem:[%s706 + $0x60] sm:$0xff]
        %v720 = vld [vmem:[%s706 + $0x68] sm:$0xff]
        %v721 = vld [vmem:[%s706 + $0x70] sm:$0xff]
        %v722 = vld [vmem:[%s706 + $0x78] sm:$0xff]
        %723 = vmatprep.subr.mxu0 0.0
        %724 = vmatpush1.msra.mxu0 %v707
        %725 = vmatprep.subr.mxu0 0.0
        %726 = vmatpush1.msra.mxu0 %v708
        %727 = vmatprep.subr.mxu0 0.0
        %728 = vmatpush1.msra.mxu0 %v709
        %729 = vmatprep.subr.mxu0 0.0
        %730 = vmatpush1.msra.mxu0 %v710
        %731 = vmatprep.subr.mxu0 0.0
        %732 = vmatpush1.msra.mxu0 %v711
        %733 = vmatprep.subr.mxu0 0.0
        %734 = vmatpush1.msra.mxu0 %v712
        %735 = vmatprep.subr.mxu0 0.0
        %736 = vmatpush1.msra.mxu0 %v713
        %737 = vmatprep.subr.mxu0 0.0
        %738 = vmatpush1.msra.mxu0 %v714
        %739 = vmatprep.subr.mxu0 0.0
        %740 = vmatpush1.msra.mxu0 %v715
        %741 = vmatprep.subr.mxu0 0.0
        %742 = vmatpush1.msra.mxu0 %v716
        %743 = vmatprep.subr.mxu0 0.0
        %744 = vmatpush1.msra.mxu0 %v717
        %745 = vmatprep.subr.mxu0 0.0
        %746 = vmatpush1.msra.mxu0 %v718
        %747 = vmatprep.subr.mxu0 0.0
        %748 = vmatpush1.msra.mxu0 %v719
        %749 = vmatprep.subr.mxu0 0.0
        %750 = vmatpush1.msra.mxu0 %v720
        %751 = vmatprep.subr.mxu0 0.0
        %752 = vmatpush1.msra.mxu0 %v721
        %753 = vmatprep.subr.mxu0 0.0
        %754 = vmatpush1.msra.mxu0 %v722
        %755 = vmatprep.subr.mxu0 0.0
        %756 = vmatpush1.msra.mxu0 0.0
        %757 = vmatprep.subr.mxu0 0.0
        %758 = vmatpush1.msra.mxu0 0.0
        %759 = vmatprep.subr.mxu0 0.0
        %760 = vmatpush1.msra.mxu0 0.0
        %761 = vmatprep.subr.mxu0 0.0
        %762 = vmatpush1.msra.mxu0 0.0
        %763 = vmatprep.subr.mxu0 0.0
        %764 = vmatpush1.msra.mxu0 0.0
        %765 = vmatprep.subr.mxu0 0.0
        %766 = vmatpush1.msra.mxu0 0.0
        %767 = vmatprep.subr.mxu0 0.0
        %768 = vmatpush1.msra.mxu0 0.0
        %769 = vmatprep.subr.mxu0 0.0
        %770 = vmatpush1.msra.mxu0 0.0
        %771 = vmatprep.subr.mxu0 0.0
        %772 = vmatpush1.msra.mxu0 0.0
        %773 = vmatprep.subr.mxu0 0.0
        %774 = vmatpush1.msra.mxu0 0.0
        %775 = vmatprep.subr.mxu0 0.0
        %776 = vmatpush1.msra.mxu0 0.0
        %777 = vmatprep.subr.mxu0 0.0
        %778 = vmatpush1.msra.mxu0 0.0
        %779 = vmatprep.subr.mxu0 0.0
        %780 = vmatpush1.msra.mxu0 0.0
        %781 = vmatprep.subr.mxu0 0.0
        %782 = vmatpush1.msra.mxu0 0.0
        %783 = vmatprep.subr.mxu0 0.0
        %784 = vmatpush1.msra.mxu0 0.0
        %785 = vmatprep.subr.mxu0 0.0
        %786 = vmatpush1.msra.mxu0 0.0
        %787 = vmatprep.mubr.f32.mxu0 0.0
        %788 = vmatmul.mubr.f32.gmra.mrb[0].mxu0 %v690
        %v789 = vpop.f32.mrb[0].mxu0
        %v790 = vadd.f32 0.0, %v789
        %v791 = vpop.f32.mrb[0].mxu0
        %792 = vmatprep.mubr.f32.mxu0 0.0
        %793 = vmatmul.mubr.f32.gmra.mrb[0].mxu0 %v691
        %v794 = vpop.f32.mrb[0].mxu0
        %v795 = vadd.f32 0.0, %v794
        %v796 = vpop.f32.mrb[0].mxu0
        %797 = vmatprep.mubr.f32.mxu0 0.0
        %798 = vmatmul.mubr.f32.gmra.mrb[0].mxu0 %v692
        %v799 = vpop.f32.mrb[0].mxu0
        %v800 = vadd.f32 0.0, %v799
        %v801 = vpop.f32.mrb[0].mxu0
        %802 = vmatprep.mubr.f32.mxu0 0.0
        %803 = vmatmul.mubr.f32.gmra.mrb[0].mxu0 %v693
        %v804 = vpop.f32.mrb[0].mxu0
        %v805 = vadd.f32 0.0, %v804
        %v806 = vpop.f32.mrb[0].mxu0
        %807 = vmatprep.mubr.f32.mxu0 0.0
        %808 = vmatmul.mubr.f32.gmra.mrb[0].mxu0 %v694
        %v809 = vpop.f32.mrb[0].mxu0
        %v810 = vadd.f32 0.0, %v809
        %v811 = vpop.f32.mrb[0].mxu0
        %812 = vmatprep.mubr.f32.mxu0 0.0
        %813 = vmatmul.mubr.f32.gmra.mrb[0].mxu0 %v695
        %v814 = vpop.f32.mrb[0].mxu0
        %v815 = vadd.f32 0.0, %v814
        %v816 = vpop.f32.mrb[0].mxu0
        %817 = vmatprep.mubr.f32.mxu0 0.0
        %818 = vmatmul.mubr.f32.gmra.mrb[0].mxu0 %v696
        %v819 = vpop.f32.mrb[0].mxu0
        %v820 = vadd.f32 0.0, %v819
        %v821 = vpop.f32.mrb[0].mxu0
        %822 = vmatprep.mubr.f32.mxu0 0.0
        %823 = vmatmul.mubr.f32.gmra.mrb[0].mxu0 %v697
        %v824 = vpop.f32.mrb[0].mxu0
        %v825 = vadd.f32 0.0, %v824
        %v826 = vpop.f32.mrb[0].mxu0
        %827 = vmatprep.mubr.f32.mxu0 0.0
        %828 = vmatmul.mubr.f32.gmra.mrb[0].mxu0 %v698
        %v829 = vpop.f32.mrb[0].mxu0
        %v830 = vadd.f32 0.0, %v829
        %v831 = vpop.f32.mrb[0].mxu0
        %832 = vmatprep.mubr.f32.mxu0 0.0
        %833 = vmatmul.mubr.f32.gmra.mrb[0].mxu0 %v699
        %v834 = vpop.f32.mrb[0].mxu0
        %v835 = vadd.f32 0.0, %v834
        %v836 = vpop.f32.mrb[0].mxu0
        %837 = vmatprep.mubr.f32.mxu0 0.0
        %838 = vmatmul.mubr.f32.gmra.mrb[0].mxu0 %v700
        %v839 = vpop.f32.mrb[0].mxu0
        %v840 = vadd.f32 0.0, %v839
        %v841 = vpop.f32.mrb[0].mxu0
        %842 = vmatprep.mubr.f32.mxu0 0.0
        %843 = vmatmul.mubr.f32.gmra.mrb[0].mxu0 %v701
        %v844 = vpop.f32.mrb[0].mxu0
        %v845 = vadd.f32 0.0, %v844
        %v846 = vpop.f32.mrb[0].mxu0
        %847 = vmatprep.mubr.f32.mxu0 0.0
        %848 = vmatmul.mubr.f32.gmra.mrb[0].mxu0 %v702
        %v849 = vpop.f32.mrb[0].mxu0
        %v850 = vadd.f32 0.0, %v849
        %v851 = vpop.f32.mrb[0].mxu0
        %852 = vmatprep.mubr.f32.mxu0 0.0
        %853 = vmatmul.mubr.f32.gmra.mrb[0].mxu0 %v703
        %v854 = vpop.f32.mrb[0].mxu0
        %v855 = vadd.f32 0.0, %v854
        %v856 = vpop.f32.mrb[0].mxu0
        %857 = vmatprep.mubr.f32.mxu0 0.0
        %858 = vmatmul.mubr.f32.gmra.mrb[0].mxu0 %v704
        %v859 = vpop.f32.mrb[0].mxu0
        %v860 = vadd.f32 0.0, %v859
        %v861 = vpop.f32.mrb[0].mxu0
        %862 = vmatprep.mubr.f32.mxu0 0.0
        %863 = vmatmul.mubr.f32.gmra.mrb[0].mxu0 %v705
        %v864 = vpop.f32.mrb[0].mxu0
        %v865 = vadd.f32 0.0, %v864
        %v866 = vpop.f32.mrb[0].mxu0
        %867 = vdwg.mxu0
        %v868 = vadd.f32 %v612, %v790
        %v869 = vadd.f32 %v617, %v795
        %v870 = vadd.f32 %v622, %v800
        %v871 = vadd.f32 %v627, %v805
        %v872 = vadd.f32 %v632, %v810
        %v873 = vadd.f32 %v637, %v815
        %v874 = vadd.f32 %v642, %v820
        %v875 = vadd.f32 %v647, %v825
        %v876 = vadd.f32 %v652, %v830
        %v877 = vadd.f32 %v657, %v835
        %v878 = vadd.f32 %v662, %v840
        %v879 = vadd.f32 %v667, %v845
        %v880 = vadd.f32 %v672, %v850
        %v881 = vadd.f32 %v677, %v855
        %v882 = vadd.f32 %v682, %v860
        %v883 = vadd.f32 %v687, %v865
        %v884 = vld [vmem:[%s321] sm:$0xff]
        %v885 = vld [vmem:[%s321 + $0x8] sm:$0xff]
        %v886 = vld [vmem:[%s321 + $0x18] sm:$0xff]
        %v887 = vld [vmem:[%s321 + $0x20] sm:$0xff]
        %v888 = vld [vmem:[%s321 + $0x30] sm:$0xff]
        %v889 = vld [vmem:[%s321 + $0x38] sm:$0xff]
        %v890 = vld [vmem:[%s321 + $0x48] sm:$0xff]
        %v891 = vld [vmem:[%s321 + $0x50] sm:$0xff]
        %v892 = vld [vmem:[%s321 + $0x60] sm:$0xff]
        %v893 = vld [vmem:[%s321 + $0x68] sm:$0xff]
        %v894 = vld [vmem:[%s321 + $0x78] sm:$0xff]
        %v895 = vld [vmem:[%s321 + $0x80] sm:$0xff]
        %v896 = vld [vmem:[%s321 + $0x90] sm:$0xff]
        %v897 = vld [vmem:[%s321 + $0x98] sm:$0xff]
        %v898 = vld [vmem:[%s321 + $0xa8] sm:$0xff]
        %v899 = vld [vmem:[%s321 + $0xb0] sm:$0xff]
        %s900 = scalar_lea.vmem %s3, 384
        %v901 = vld [vmem:[%s900] sm:$0xff]
        %v902 = vld [vmem:[%s900 + $0x8] sm:$0xff]
        %v903 = vld [vmem:[%s900 + $0x10] sm:$0xff]
        %v904 = vld [vmem:[%s900 + $0x18] sm:$0xff]
        %v905 = vld [vmem:[%s900 + $0x20] sm:$0xff]
        %v906 = vld [vmem:[%s900 + $0x28] sm:$0xff]
        %v907 = vld [vmem:[%s900 + $0x30] sm:$0xff]
        %v908 = vld [vmem:[%s900 + $0x38] sm:$0xff]
        %v909 = vld [vmem:[%s900 + $0x40] sm:$0xff]
        %v910 = vld [vmem:[%s900 + $0x48] sm:$0xff]
        %v911 = vld [vmem:[%s900 + $0x50] sm:$0xff]
        %v912 = vld [vmem:[%s900 + $0x58] sm:$0xff]
        %v913 = vld [vmem:[%s900 + $0x60] sm:$0xff]
        %v914 = vld [vmem:[%s900 + $0x68] sm:$0xff]
        %v915 = vld [vmem:[%s900 + $0x70] sm:$0xff]
        %v916 = vld [vmem:[%s900 + $0x78] sm:$0xff]
        %917 = vmatprep.subr.mxu0 0.0
        %918 = vmatpush1.msra.mxu0 %v901
        %919 = vmatprep.subr.mxu0 0.0
        %920 = vmatpush1.msra.mxu0 %v902
        %921 = vmatprep.subr.mxu0 0.0
        %922 = vmatpush1.msra.mxu0 %v903
        %923 = vmatprep.subr.mxu0 0.0
        %924 = vmatpush1.msra.mxu0 %v904
        %925 = vmatprep.subr.mxu0 0.0
        %926 = vmatpush1.msra.mxu0 %v905
        %927 = vmatprep.subr.mxu0 0.0
        %928 = vmatpush1.msra.mxu0 %v906
        %929 = vmatprep.subr.mxu0 0.0
        %930 = vmatpush1.msra.mxu0 %v907
        %931 = vmatprep.subr.mxu0 0.0
        %932 = vmatpush1.msra.mxu0 %v908
        %933 = vmatprep.subr.mxu0 0.0
        %934 = vmatpush1.msra.mxu0 %v909
        %935 = vmatprep.subr.mxu0 0.0
        %936 = vmatpush1.msra.mxu0 %v910
        %937 = vmatprep.subr.mxu0 0.0
        %938 = vmatpush1.msra.mxu0 %v911
        %939 = vmatprep.subr.mxu0 0.0
        %940 = vmatpush1.msra.mxu0 %v912
        %941 = vmatprep.subr.mxu0 0.0
        %942 = vmatpush1.msra.mxu0 %v913
        %943 = vmatprep.subr.mxu0 0.0
        %944 = vmatpush1.msra.mxu0 %v914
        %945 = vmatprep.subr.mxu0 0.0
        %946 = vmatpush1.msra.mxu0 %v915
        %947 = vmatprep.subr.mxu0 0.0
        %948 = vmatpush1.msra.mxu0 %v916
        %949 = vmatprep.subr.mxu0 0.0
        %950 = vmatpush1.msra.mxu0 0.0
        %951 = vmatprep.subr.mxu0 0.0
        %952 = vmatpush1.msra.mxu0 0.0
        %953 = vmatprep.subr.mxu0 0.0
        %954 = vmatpush1.msra.mxu0 0.0
        %955 = vmatprep.subr.mxu0 0.0
        %956 = vmatpush1.msra.mxu0 0.0
        %957 = vmatprep.subr.mxu0 0.0
        %958 = vmatpush1.msra.mxu0 0.0
        %959 = vmatprep.subr.mxu0 0.0
        %960 = vmatpush1.msra.mxu0 0.0
        %961 = vmatprep.subr.mxu0 0.0
        %962 = vmatpush1.msra.mxu0 0.0
        %963 = vmatprep.subr.mxu0 0.0
        %964 = vmatpush1.msra.mxu0 0.0
        %965 = vmatprep.subr.mxu0 0.0
        %966 = vmatpush1.msra.mxu0 0.0
        %967 = vmatprep.subr.mxu0 0.0
        %968 = vmatpush1.msra.mxu0 0.0
        %969 = vmatprep.subr.mxu0 0.0
        %970 = vmatpush1.msra.mxu0 0.0
        %971 = vmatprep.subr.mxu0 0.0
        %972 = vmatpush1.msra.mxu0 0.0
        %973 = vmatprep.subr.mxu0 0.0
        %974 = vmatpush1.msra.mxu0 0.0
        %975 = vmatprep.subr.mxu0 0.0
        %976 = vmatpush1.msra.mxu0 0.0
        %977 = vmatprep.subr.mxu0 0.0
        %978 = vmatpush1.msra.mxu0 0.0
        %979 = vmatprep.subr.mxu0 0.0
        %980 = vmatpush1.msra.mxu0 0.0
        %981 = vmatprep.mubr.f32.mxu0 0.0
        %982 = vmatmul.mubr.f32.gmra.mrb[0].mxu0 %v884
        %v983 = vpop.f32.mrb[0].mxu0
        %v984 = vadd.f32 0.0, %v983
        %v985 = vpop.f32.mrb[0].mxu0
        %986 = vmatprep.mubr.f32.mxu0 0.0
        %987 = vmatmul.mubr.f32.gmra.mrb[0].mxu0 %v885
        %v988 = vpop.f32.mrb[0].mxu0
        %v989 = vadd.f32 0.0, %v988
        %v990 = vpop.f32.mrb[0].mxu0
        %991 = vmatprep.mubr.f32.mxu0 0.0
        %992 = vmatmul.mubr.f32.gmra.mrb[0].mxu0 %v886
        %v993 = vpop.f32.mrb[0].mxu0
        %v994 = vadd.f32 0.0, %v993
        %v995 = vpop.f32.mrb[0].mxu0
        %996 = vmatprep.mubr.f32.mxu0 0.0
        %997 = vmatmul.mubr.f32.gmra.mrb[0].mxu0 %v887
        %v998 = vpop.f32.mrb[0].mxu0
        %v999 = vadd.f32 0.0, %v998
        %v1000 = vpop.f32.mrb[0].mxu0
        %1001 = vmatprep.mubr.f32.mxu0 0.0
        %1002 = vmatmul.mubr.f32.gmra.mrb[0].mxu0 %v888
        %v1003 = vpop.f32.mrb[0].mxu0
        %v1004 = vadd.f32 0.0, %v1003
        %v1005 = vpop.f32.mrb[0].mxu0
        %1006 = vmatprep.mubr.f32.mxu0 0.0
        %1007 = vmatmul.mubr.f32.gmra.mrb[0].mxu0 %v889
        %v1008 = vpop.f32.mrb[0].mxu0
        %v1009 = vadd.f32 0.0, %v1008
        %v1010 = vpop.f32.mrb[0].mxu0
        %1011 = vmatprep.mubr.f32.mxu0 0.0
        %1012 = vmatmul.mubr.f32.gmra.mrb[0].mxu0 %v890
        %v1013 = vpop.f32.mrb[0].mxu0
        %v1014 = vadd.f32 0.0, %v1013
        %v1015 = vpop.f32.mrb[0].mxu0
        %1016 = vmatprep.mubr.f32.mxu0 0.0
        %1017 = vmatmul.mubr.f32.gmra.mrb[0].mxu0 %v891
        %v1018 = vpop.f32.mrb[0].mxu0
        %v1019 = vadd.f32 0.0, %v1018
        %v1020 = vpop.f32.mrb[0].mxu0
        %1021 = vmatprep.mubr.f32.mxu0 0.0
        %1022 = vmatmul.mubr.f32.gmra.mrb[0].mxu0 %v892
        %v1023 = vpop.f32.mrb[0].mxu0
        %v1024 = vadd.f32 0.0, %v1023
        %v1025 = vpop.f32.mrb[0].mxu0
        %1026 = vmatprep.mubr.f32.mxu0 0.0
        %1027 = vmatmul.mubr.f32.gmra.mrb[0].mxu0 %v893
        %v1028 = vpop.f32.mrb[0].mxu0
        %v1029 = vadd.f32 0.0, %v1028
        %v1030 = vpop.f32.mrb[0].mxu0
        %1031 = vmatprep.mubr.f32.mxu0 0.0
        %1032 = vmatmul.mubr.f32.gmra.mrb[0].mxu0 %v894
        %v1033 = vpop.f32.mrb[0].mxu0
        %v1034 = vadd.f32 0.0, %v1033
        %v1035 = vpop.f32.mrb[0].mxu0
        %1036 = vmatprep.mubr.f32.mxu0 0.0
        %1037 = vmatmul.mubr.f32.gmra.mrb[0].mxu0 %v895
        %v1038 = vpop.f32.mrb[0].mxu0
        %v1039 = vadd.f32 0.0, %v1038
        %v1040 = vpop.f32.mrb[0].mxu0
        %1041 = vmatprep.mubr.f32.mxu0 0.0
        %1042 = vmatmul.mubr.f32.gmra.mrb[0].mxu0 %v896
        %v1043 = vpop.f32.mrb[0].mxu0
        %v1044 = vadd.f32 0.0, %v1043
        %v1045 = vpop.f32.mrb[0].mxu0
        %1046 = vmatprep.mubr.f32.mxu0 0.0
        %1047 = vmatmul.mubr.f32.gmra.mrb[0].mxu0 %v897
        %v1048 = vpop.f32.mrb[0].mxu0
        %v1049 = vadd.f32 0.0, %v1048
        %v1050 = vpop.f32.mrb[0].mxu0
        %1051 = vmatprep.mubr.f32.mxu0 0.0
        %1052 = vmatmul.mubr.f32.gmra.mrb[0].mxu0 %v898
        %v1053 = vpop.f32.mrb[0].mxu0
        %v1054 = vadd.f32 0.0, %v1053
        %v1055 = vpop.f32.mrb[0].mxu0
        %1056 = vmatprep.mubr.f32.mxu0 0.0
        %1057 = vmatmul.mubr.f32.gmra.mrb[0].mxu0 %v899
        %v1058 = vpop.f32.mrb[0].mxu0
        %v1059 = vadd.f32 0.0, %v1058
        %v1060 = vpop.f32.mrb[0].mxu0
        %1061 = vdwg.mxu0
        %v1062 = vadd.f32 %v868, %v984
        %v1063 = vadd.f32 %v869, %v989
        %v1064 = vadd.f32 %v870, %v994
        %v1065 = vadd.f32 %v871, %v999
        %v1066 = vadd.f32 %v872, %v1004
        %v1067 = vadd.f32 %v873, %v1009
        %v1068 = vadd.f32 %v874, %v1014
        %v1069 = vadd.f32 %v875, %v1019
        %v1070 = vadd.f32 %v876, %v1024
        %v1071 = vadd.f32 %v877, %v1029
        %v1072 = vadd.f32 %v878, %v1034
        %v1073 = vadd.f32 %v879, %v1039
        %v1074 = vadd.f32 %v880, %v1044
        %v1075 = vadd.f32 %v881, %v1049
        %v1076 = vadd.f32 %v882, %v1054
        %v1077 = vadd.f32 %v883, %v1059
        %v1078 = vld [vmem:[%s321 + $0x1] sm:$0xff]
        %v1079 = vld [vmem:[%s321 + $0x9] sm:$0xff]
        %v1080 = vld [vmem:[%s321 + $0x19] sm:$0xff]
        %v1081 = vld [vmem:[%s321 + $0x21] sm:$0xff]
        %v1082 = vld [vmem:[%s321 + $0x31] sm:$0xff]
        %v1083 = vld [vmem:[%s321 + $0x39] sm:$0xff]
        %v1084 = vld [vmem:[%s321 + $0x49] sm:$0xff]
        %v1085 = vld [vmem:[%s321 + $0x51] sm:$0xff]
        %v1086 = vld [vmem:[%s321 + $0x61] sm:$0xff]
        %v1087 = vld [vmem:[%s321 + $0x69] sm:$0xff]
        %v1088 = vld [vmem:[%s321 + $0x79] sm:$0xff]
        %v1089 = vld [vmem:[%s321 + $0x81] sm:$0xff]
        %v1090 = vld [vmem:[%s321 + $0x91] sm:$0xff]
        %v1091 = vld [vmem:[%s321 + $0x99] sm:$0xff]
        %v1092 = vld [vmem:[%s321 + $0xa9] sm:$0xff]
        %v1093 = vld [vmem:[%s321 + $0xb1] sm:$0xff]
        %s1094 = scalar_lea.vmem %s3, 512
        %v1095 = vld [vmem:[%s1094] sm:$0xff]
        %v1096 = vld [vmem:[%s1094 + $0x8] sm:$0xff]
        %v1097 = vld [vmem:[%s1094 + $0x10] sm:$0xff]
        %v1098 = vld [vmem:[%s1094 + $0x18] sm:$0xff]
        %v1099 = vld [vmem:[%s1094 + $0x20] sm:$0xff]
        %v1100 = vld [vmem:[%s1094 + $0x28] sm:$0xff]
        %v1101 = vld [vmem:[%s1094 + $0x30] sm:$0xff]
        %v1102 = vld [vmem:[%s1094 + $0x38] sm:$0xff]
        %v1103 = vld [vmem:[%s1094 + $0x40] sm:$0xff]
        %v1104 = vld [vmem:[%s1094 + $0x48] sm:$0xff]
        %v1105 = vld [vmem:[%s1094 + $0x50] sm:$0xff]
        %v1106 = vld [vmem:[%s1094 + $0x58] sm:$0xff]
        %v1107 = vld [vmem:[%s1094 + $0x60] sm:$0xff]
        %v1108 = vld [vmem:[%s1094 + $0x68] sm:$0xff]
        %v1109 = vld [vmem:[%s1094 + $0x70] sm:$0xff]
        %v1110 = vld [vmem:[%s1094 + $0x78] sm:$0xff]
        %1111 = vmatprep.subr.mxu0 0.0
        %1112 = vmatpush1.msra.mxu0 %v1095
        %1113 = vmatprep.subr.mxu0 0.0
        %1114 = vmatpush1.msra.mxu0 %v1096
        %1115 = vmatprep.subr.mxu0 0.0
        %1116 = vmatpush1.msra.mxu0 %v1097
        %1117 = vmatprep.subr.mxu0 0.0
        %1118 = vmatpush1.msra.mxu0 %v1098
        %1119 = vmatprep.subr.mxu0 0.0
        %1120 = vmatpush1.msra.mxu0 %v1099
        %1121 = vmatprep.subr.mxu0 0.0
        %1122 = vmatpush1.msra.mxu0 %v1100
        %1123 = vmatprep.subr.mxu0 0.0
        %1124 = vmatpush1.msra.mxu0 %v1101
        %1125 = vmatprep.subr.mxu0 0.0
        %1126 = vmatpush1.msra.mxu0 %v1102
        %1127 = vmatprep.subr.mxu0 0.0
        %1128 = vmatpush1.msra.mxu0 %v1103
        %1129 = vmatprep.subr.mxu0 0.0
        %1130 = vmatpush1.msra.mxu0 %v1104
        %1131 = vmatprep.subr.mxu0 0.0
        %1132 = vmatpush1.msra.mxu0 %v1105
        %1133 = vmatprep.subr.mxu0 0.0
        %1134 = vmatpush1.msra.mxu0 %v1106
        %1135 = vmatprep.subr.mxu0 0.0
        %1136 = vmatpush1.msra.mxu0 %v1107
        %1137 = vmatprep.subr.mxu0 0.0
        %1138 = vmatpush1.msra.mxu0 %v1108
        %1139 = vmatprep.subr.mxu0 0.0
        %1140 = vmatpush1.msra.mxu0 %v1109
        %1141 = vmatprep.subr.mxu0 0.0
        %1142 = vmatpush1.msra.mxu0 %v1110
        %1143 = vmatprep.subr.mxu0 0.0
        %1144 = vmatpush1.msra.mxu0 0.0
        %1145 = vmatprep.subr.mxu0 0.0
        %1146 = vmatpush1.msra.mxu0 0.0
        %1147 = vmatprep.subr.mxu0 0.0
        %1148 = vmatpush1.msra.mxu0 0.0
        %1149 = vmatprep.subr.mxu0 0.0
        %1150 = vmatpush1.msra.mxu0 0.0
        %1151 = vmatprep.subr.mxu0 0.0
        %1152 = vmatpush1.msra.mxu0 0.0
        %1153 = vmatprep.subr.mxu0 0.0
        %1154 = vmatpush1.msra.mxu0 0.0
        %1155 = vmatprep.subr.mxu0 0.0
        %1156 = vmatpush1.msra.mxu0 0.0
        %1157 = vmatprep.subr.mxu0 0.0
        %1158 = vmatpush1.msra.mxu0 0.0
        %1159 = vmatprep.subr.mxu0 0.0
        %1160 = vmatpush1.msra.mxu0 0.0
        %1161 = vmatprep.subr.mxu0 0.0
        %1162 = vmatpush1.msra.mxu0 0.0
        %1163 = vmatprep.subr.mxu0 0.0
        %1164 = vmatpush1.msra.mxu0 0.0
        %1165 = vmatprep.subr.mxu0 0.0
        %1166 = vmatpush1.msra.mxu0 0.0
        %1167 = vmatprep.subr.mxu0 0.0
        %1168 = vmatpush1.msra.mxu0 0.0
        %1169 = vmatprep.subr.mxu0 0.0
        %1170 = vmatpush1.msra.mxu0 0.0
        %1171 = vmatprep.subr.mxu0 0.0
        %1172 = vmatpush1.msra.mxu0 0.0
        %1173 = vmatprep.subr.mxu0 0.0
        %1174 = vmatpush1.msra.mxu0 0.0
        %1175 = vmatprep.mubr.f32.mxu0 0.0
        %1176 = vmatmul.mubr.f32.gmra.mrb[0].mxu0 %v1078
        %v1177 = vpop.f32.mrb[0].mxu0
        %v1178 = vadd.f32 0.0, %v1177
        %v1179 = vpop.f32.mrb[0].mxu0
        %1180 = vmatprep.mubr.f32.mxu0 0.0
        %1181 = vmatmul.mubr.f32.gmra.mrb[0].mxu0 %v1079
        %v1182 = vpop.f32.mrb[0].mxu0
        %v1183 = vadd.f32 0.0, %v1182
        %v1184 = vpop.f32.mrb[0].mxu0
        %1185 = vmatprep.mubr.f32.mxu0 0.0
        %1186 = vmatmul.mubr.f32.gmra.mrb[0].mxu0 %v1080
        %v1187 = vpop.f32.mrb[0].mxu0
        %v1188 = vadd.f32 0.0, %v1187
        %v1189 = vpop.f32.mrb[0].mxu0
        %1190 = vmatprep.mubr.f32.mxu0 0.0
        %1191 = vmatmul.mubr.f32.gmra.mrb[0].mxu0 %v1081
        %v1192 = vpop.f32.mrb[0].mxu0
        %v1193 = vadd.f32 0.0, %v1192
        %v1194 = vpop.f32.mrb[0].mxu0
        %1195 = vmatprep.mubr.f32.mxu0 0.0
        %1196 = vmatmul.mubr.f32.gmra.mrb[0].mxu0 %v1082
        %v1197 = vpop.f32.mrb[0].mxu0
        %v1198 = vadd.f32 0.0, %v1197
        %v1199 = vpop.f32.mrb[0].mxu0
        %1200 = vmatprep.mubr.f32.mxu0 0.0
        %1201 = vmatmul.mubr.f32.gmra.mrb[0].mxu0 %v1083
        %v1202 = vpop.f32.mrb[0].mxu0
        %v1203 = vadd.f32 0.0, %v1202
        %v1204 = vpop.f32.mrb[0].mxu0
        %1205 = vmatprep.mubr.f32.mxu0 0.0
        %1206 = vmatmul.mubr.f32.gmra.mrb[0].mxu0 %v1084
        %v1207 = vpop.f32.mrb[0].mxu0
        %v1208 = vadd.f32 0.0, %v1207
        %v1209 = vpop.f32.mrb[0].mxu0
        %1210 = vmatprep.mubr.f32.mxu0 0.0
        %1211 = vmatmul.mubr.f32.gmra.mrb[0].mxu0 %v1085
        %v1212 = vpop.f32.mrb[0].mxu0
        %v1213 = vadd.f32 0.0, %v1212
        %v1214 = vpop.f32.mrb[0].mxu0
        %1215 = vmatprep.mubr.f32.mxu0 0.0
        %1216 = vmatmul.mubr.f32.gmra.mrb[0].mxu0 %v1086
        %v1217 = vpop.f32.mrb[0].mxu0
        %v1218 = vadd.f32 0.0, %v1217
        %v1219 = vpop.f32.mrb[0].mxu0
        %1220 = vmatprep.mubr.f32.mxu0 0.0
        %1221 = vmatmul.mubr.f32.gmra.mrb[0].mxu0 %v1087
        %v1222 = vpop.f32.mrb[0].mxu0
        %v1223 = vadd.f32 0.0, %v1222
        %v1224 = vpop.f32.mrb[0].mxu0
        %1225 = vmatprep.mubr.f32.mxu0 0.0
        %1226 = vmatmul.mubr.f32.gmra.mrb[0].mxu0 %v1088
        %v1227 = vpop.f32.mrb[0].mxu0
        %v1228 = vadd.f32 0.0, %v1227
        %v1229 = vpop.f32.mrb[0].mxu0
        %1230 = vmatprep.mubr.f32.mxu0 0.0
        %1231 = vmatmul.mubr.f32.gmra.mrb[0].mxu0 %v1089
        %v1232 = vpop.f32.mrb[0].mxu0
        %v1233 = vadd.f32 0.0, %v1232
        %v1234 = vpop.f32.mrb[0].mxu0
        %1235 = vmatprep.mubr.f32.mxu0 0.0
        %1236 = vmatmul.mubr.f32.gmra.mrb[0].mxu0 %v1090
        %v1237 = vpop.f32.mrb[0].mxu0
        %v1238 = vadd.f32 0.0, %v1237
        %v1239 = vpop.f32.mrb[0].mxu0
        %1240 = vmatprep.mubr.f32.mxu0 0.0
        %1241 = vmatmul.mubr.f32.gmra.mrb[0].mxu0 %v1091
        %v1242 = vpop.f32.mrb[0].mxu0
        %v1243 = vadd.f32 0.0, %v1242
        %v1244 = vpop.f32.mrb[0].mxu0
        %1245 = vmatprep.mubr.f32.mxu0 0.0
        %1246 = vmatmul.mubr.f32.gmra.mrb[0].mxu0 %v1092
        %v1247 = vpop.f32.mrb[0].mxu0
        %v1248 = vadd.f32 0.0, %v1247
        %v1249 = vpop.f32.mrb[0].mxu0
        %1250 = vmatprep.mubr.f32.mxu0 0.0
        %1251 = vmatmul.mubr.f32.gmra.mrb[0].mxu0 %v1093
        %v1252 = vpop.f32.mrb[0].mxu0
        %v1253 = vadd.f32 0.0, %v1252
        %v1254 = vpop.f32.mrb[0].mxu0
        %1255 = vdwg.mxu0
        %v1256 = vadd.f32 %v1062, %v1178
        %v1257 = vadd.f32 %v1063, %v1183
        %v1258 = vadd.f32 %v1064, %v1188
        %v1259 = vadd.f32 %v1065, %v1193
        %v1260 = vadd.f32 %v1066, %v1198
        %v1261 = vadd.f32 %v1067, %v1203
        %v1262 = vadd.f32 %v1068, %v1208
        %v1263 = vadd.f32 %v1069, %v1213
        %v1264 = vadd.f32 %v1070, %v1218
        %v1265 = vadd.f32 %v1071, %v1223
        %v1266 = vadd.f32 %v1072, %v1228
        %v1267 = vadd.f32 %v1073, %v1233
        %v1268 = vadd.f32 %v1074, %v1238
        %v1269 = vadd.f32 %v1075, %v1243
        %v1270 = vadd.f32 %v1076, %v1248
        %v1271 = vadd.f32 %v1077, %v1253
        %v1272 = vld [vmem:[%s321 + $0x2] sm:$0xff]
        %v1273 = vld [vmem:[%s321 + $0xa] sm:$0xff]
        %v1274 = vld [vmem:[%s321 + $0x1a] sm:$0xff]
        %v1275 = vld [vmem:[%s321 + $0x22] sm:$0xff]
        %v1276 = vld [vmem:[%s321 + $0x32] sm:$0xff]
        %v1277 = vld [vmem:[%s321 + $0x3a] sm:$0xff]
        %v1278 = vld [vmem:[%s321 + $0x4a] sm:$0xff]
        %v1279 = vld [vmem:[%s321 + $0x52] sm:$0xff]
        %v1280 = vld [vmem:[%s321 + $0x62] sm:$0xff]
        %v1281 = vld [vmem:[%s321 + $0x6a] sm:$0xff]
        %v1282 = vld [vmem:[%s321 + $0x7a] sm:$0xff]
        %v1283 = vld [vmem:[%s321 + $0x82] sm:$0xff]
        %v1284 = vld [vmem:[%s321 + $0x92] sm:$0xff]
        %v1285 = vld [vmem:[%s321 + $0x9a] sm:$0xff]
        %v1286 = vld [vmem:[%s321 + $0xaa] sm:$0xff]
        %v1287 = vld [vmem:[%s321 + $0xb2] sm:$0xff]
        %s1288 = scalar_lea.vmem %s3, 640
        %v1289 = vld [vmem:[%s1288] sm:$0xff]
        %v1290 = vld [vmem:[%s1288 + $0x8] sm:$0xff]
        %v1291 = vld [vmem:[%s1288 + $0x10] sm:$0xff]
        %v1292 = vld [vmem:[%s1288 + $0x18] sm:$0xff]
        %v1293 = vld [vmem:[%s1288 + $0x20] sm:$0xff]
        %v1294 = vld [vmem:[%s1288 + $0x28] sm:$0xff]
        %v1295 = vld [vmem:[%s1288 + $0x30] sm:$0xff]
        %v1296 = vld [vmem:[%s1288 + $0x38] sm:$0xff]
        %v1297 = vld [vmem:[%s1288 + $0x40] sm:$0xff]
        %v1298 = vld [vmem:[%s1288 + $0x48] sm:$0xff]
        %v1299 = vld [vmem:[%s1288 + $0x50] sm:$0xff]
        %v1300 = vld [vmem:[%s1288 + $0x58] sm:$0xff]
        %v1301 = vld [vmem:[%s1288 + $0x60] sm:$0xff]
        %v1302 = vld [vmem:[%s1288 + $0x68] sm:$0xff]
        %v1303 = vld [vmem:[%s1288 + $0x70] sm:$0xff]
        %v1304 = vld [vmem:[%s1288 + $0x78] sm:$0xff]
        %1305 = vmatprep.subr.mxu0 0.0
        %1306 = vmatpush1.msra.mxu0 %v1289
        %1307 = vmatprep.subr.mxu0 0.0
        %1308 = vmatpush1.msra.mxu0 %v1290
        %1309 = vmatprep.subr.mxu0 0.0
        %1310 = vmatpush1.msra.mxu0 %v1291
        %1311 = vmatprep.subr.mxu0 0.0
        %1312 = vmatpush1.msra.mxu0 %v1292
        %1313 = vmatprep.subr.mxu0 0.0
        %1314 = vmatpush1.msra.mxu0 %v1293
        %1315 = vmatprep.subr.mxu0 0.0
        %1316 = vmatpush1.msra.mxu0 %v1294
        %1317 = vmatprep.subr.mxu0 0.0
        %1318 = vmatpush1.msra.mxu0 %v1295
        %1319 = vmatprep.subr.mxu0 0.0
        %1320 = vmatpush1.msra.mxu0 %v1296
        %1321 = vmatprep.subr.mxu0 0.0
        %1322 = vmatpush1.msra.mxu0 %v1297
        %1323 = vmatprep.subr.mxu0 0.0
        %1324 = vmatpush1.msra.mxu0 %v1298
        %1325 = vmatprep.subr.mxu0 0.0
        %1326 = vmatpush1.msra.mxu0 %v1299
        %1327 = vmatprep.subr.mxu0 0.0
        %1328 = vmatpush1.msra.mxu0 %v1300
        %1329 = vmatprep.subr.mxu0 0.0
        %1330 = vmatpush1.msra.mxu0 %v1301
        %1331 = vmatprep.subr.mxu0 0.0
        %1332 = vmatpush1.msra.mxu0 %v1302
        %1333 = vmatprep.subr.mxu0 0.0
        %1334 = vmatpush1.msra.mxu0 %v1303
        %1335 = vmatprep.subr.mxu0 0.0
        %1336 = vmatpush1.msra.mxu0 %v1304
        %1337 = vmatprep.subr.mxu0 0.0
        %1338 = vmatpush1.msra.mxu0 0.0
        %1339 = vmatprep.subr.mxu0 0.0
        %1340 = vmatpush1.msra.mxu0 0.0
        %1341 = vmatprep.subr.mxu0 0.0
        %1342 = vmatpush1.msra.mxu0 0.0
        %1343 = vmatprep.subr.mxu0 0.0
        %1344 = vmatpush1.msra.mxu0 0.0
        %1345 = vmatprep.subr.mxu0 0.0
        %1346 = vmatpush1.msra.mxu0 0.0
        %1347 = vmatprep.subr.mxu0 0.0
        %1348 = vmatpush1.msra.mxu0 0.0
        %1349 = vmatprep.subr.mxu0 0.0
        %1350 = vmatpush1.msra.mxu0 0.0
        %1351 = vmatprep.subr.mxu0 0.0
        %1352 = vmatpush1.msra.mxu0 0.0
        %1353 = vmatprep.subr.mxu0 0.0
        %1354 = vmatpush1.msra.mxu0 0.0
        %1355 = vmatprep.subr.mxu0 0.0
        %1356 = vmatpush1.msra.mxu0 0.0
        %1357 = vmatprep.subr.mxu0 0.0
        %1358 = vmatpush1.msra.mxu0 0.0
        %1359 = vmatprep.subr.mxu0 0.0
        %1360 = vmatpush1.msra.mxu0 0.0
        %1361 = vmatprep.subr.mxu0 0.0
        %1362 = vmatpush1.msra.mxu0 0.0
        %1363 = vmatprep.subr.mxu0 0.0
        %1364 = vmatpush1.msra.mxu0 0.0
        %1365 = vmatprep.subr.mxu0 0.0
        %1366 = vmatpush1.msra.mxu0 0.0
        %1367 = vmatprep.subr.mxu0 0.0
        %1368 = vmatpush1.msra.mxu0 0.0
        %1369 = vmatprep.mubr.f32.mxu0 0.0
        %1370 = vmatmul.mubr.f32.gmra.mrb[0].mxu0 %v1272
        %v1371 = vpop.f32.mrb[0].mxu0
        %v1372 = vadd.f32 0.0, %v1371
        %v1373 = vpop.f32.mrb[0].mxu0
        %1374 = vmatprep.mubr.f32.mxu0 0.0
        %1375 = vmatmul.mubr.f32.gmra.mrb[0].mxu0 %v1273
        %v1376 = vpop.f32.mrb[0].mxu0
        %v1377 = vadd.f32 0.0, %v1376
        %v1378 = vpop.f32.mrb[0].mxu0
        %1379 = vmatprep.mubr.f32.mxu0 0.0
        %1380 = vmatmul.mubr.f32.gmra.mrb[0].mxu0 %v1274
        %v1381 = vpop.f32.mrb[0].mxu0
        %v1382 = vadd.f32 0.0, %v1381
        %v1383 = vpop.f32.mrb[0].mxu0
        %1384 = vmatprep.mubr.f32.mxu0 0.0
        %1385 = vmatmul.mubr.f32.gmra.mrb[0].mxu0 %v1275
        %v1386 = vpop.f32.mrb[0].mxu0
        %v1387 = vadd.f32 0.0, %v1386
        %v1388 = vpop.f32.mrb[0].mxu0
        %1389 = vmatprep.mubr.f32.mxu0 0.0
        %1390 = vmatmul.mubr.f32.gmra.mrb[0].mxu0 %v1276
        %v1391 = vpop.f32.mrb[0].mxu0
        %v1392 = vadd.f32 0.0, %v1391
        %v1393 = vpop.f32.mrb[0].mxu0
        %1394 = vmatprep.mubr.f32.mxu0 0.0
        %1395 = vmatmul.mubr.f32.gmra.mrb[0].mxu0 %v1277
        %v1396 = vpop.f32.mrb[0].mxu0
        %v1397 = vadd.f32 0.0, %v1396
        %v1398 = vpop.f32.mrb[0].mxu0
        %1399 = vmatprep.mubr.f32.mxu0 0.0
        %1400 = vmatmul.mubr.f32.gmra.mrb[0].mxu0 %v1278
        %v1401 = vpop.f32.mrb[0].mxu0
        %v1402 = vadd.f32 0.0, %v1401
        %v1403 = vpop.f32.mrb[0].mxu0
        %1404 = vmatprep.mubr.f32.mxu0 0.0
        %1405 = vmatmul.mubr.f32.gmra.mrb[0].mxu0 %v1279
        %v1406 = vpop.f32.mrb[0].mxu0
        %v1407 = vadd.f32 0.0, %v1406
        %v1408 = vpop.f32.mrb[0].mxu0
        %1409 = vmatprep.mubr.f32.mxu0 0.0
        %1410 = vmatmul.mubr.f32.gmra.mrb[0].mxu0 %v1280
        %v1411 = vpop.f32.mrb[0].mxu0
        %v1412 = vadd.f32 0.0, %v1411
        %v1413 = vpop.f32.mrb[0].mxu0
        %1414 = vmatprep.mubr.f32.mxu0 0.0
        %1415 = vmatmul.mubr.f32.gmra.mrb[0].mxu0 %v1281
        %v1416 = vpop.f32.mrb[0].mxu0
        %v1417 = vadd.f32 0.0, %v1416
        %v1418 = vpop.f32.mrb[0].mxu0
        %1419 = vmatprep.mubr.f32.mxu0 0.0
        %1420 = vmatmul.mubr.f32.gmra.mrb[0].mxu0 %v1282
        %v1421 = vpop.f32.mrb[0].mxu0
        %v1422 = vadd.f32 0.0, %v1421
        %v1423 = vpop.f32.mrb[0].mxu0
        %1424 = vmatprep.mubr.f32.mxu0 0.0
        %1425 = vmatmul.mubr.f32.gmra.mrb[0].mxu0 %v1283
        %v1426 = vpop.f32.mrb[0].mxu0
        %v1427 = vadd.f32 0.0, %v1426
        %v1428 = vpop.f32.mrb[0].mxu0
        %1429 = vmatprep.mubr.f32.mxu0 0.0
        %1430 = vmatmul.mubr.f32.gmra.mrb[0].mxu0 %v1284
        %v1431 = vpop.f32.mrb[0].mxu0
        %v1432 = vadd.f32 0.0, %v1431
        %v1433 = vpop.f32.mrb[0].mxu0
        %1434 = vmatprep.mubr.f32.mxu0 0.0
        %1435 = vmatmul.mubr.f32.gmra.mrb[0].mxu0 %v1285
        %v1436 = vpop.f32.mrb[0].mxu0
        %v1437 = vadd.f32 0.0, %v1436
        %v1438 = vpop.f32.mrb[0].mxu0
        %1439 = vmatprep.mubr.f32.mxu0 0.0
        %1440 = vmatmul.mubr.f32.gmra.mrb[0].mxu0 %v1286
        %v1441 = vpop.f32.mrb[0].mxu0
        %v1442 = vadd.f32 0.0, %v1441
        %v1443 = vpop.f32.mrb[0].mxu0
        %1444 = vmatprep.mubr.f32.mxu0 0.0
        %1445 = vmatmul.mubr.f32.gmra.mrb[0].mxu0 %v1287
        %v1446 = vpop.f32.mrb[0].mxu0
        %v1447 = vadd.f32 0.0, %v1446
        %v1448 = vpop.f32.mrb[0].mxu0
        %1449 = vdwg.mxu0
        %v1450 = vadd.f32 %v1256, %v1372
        %v1451 = vadd.f32 %v1257, %v1377
        %v1452 = vadd.f32 %v1258, %v1382
        %v1453 = vadd.f32 %v1259, %v1387
        %v1454 = vadd.f32 %v1260, %v1392
        %v1455 = vadd.f32 %v1261, %v1397
        %v1456 = vadd.f32 %v1262, %v1402
        %v1457 = vadd.f32 %v1263, %v1407
        %v1458 = vadd.f32 %v1264, %v1412
        %v1459 = vadd.f32 %v1265, %v1417
        %v1460 = vadd.f32 %v1266, %v1422
        %v1461 = vadd.f32 %v1267, %v1427
        %v1462 = vadd.f32 %v1268, %v1432
        %v1463 = vadd.f32 %v1269, %v1437
        %v1464 = vadd.f32 %v1270, %v1442
        %v1465 = vadd.f32 %v1271, %v1447
        %v1466 = vld [vmem:[%s332] sm:$0xff]
        %v1467 = vld [vmem:[%s332 + $0x8] sm:$0xff]
        %v1468 = vld [vmem:[%s332 + $0x18] sm:$0xff]
        %v1469 = vld [vmem:[%s332 + $0x20] sm:$0xff]
        %v1470 = vld [vmem:[%s332 + $0x30] sm:$0xff]
        %v1471 = vld [vmem:[%s332 + $0x38] sm:$0xff]
        %v1472 = vld [vmem:[%s332 + $0x48] sm:$0xff]
        %v1473 = vld [vmem:[%s332 + $0x50] sm:$0xff]
        %v1474 = vld [vmem:[%s332 + $0x60] sm:$0xff]
        %v1475 = vld [vmem:[%s332 + $0x68] sm:$0xff]
        %v1476 = vld [vmem:[%s332 + $0x78] sm:$0xff]
        %v1477 = vld [vmem:[%s332 + $0x80] sm:$0xff]
        %v1478 = vld [vmem:[%s332 + $0x90] sm:$0xff]
        %v1479 = vld [vmem:[%s332 + $0x98] sm:$0xff]
        %v1480 = vld [vmem:[%s332 + $0xa8] sm:$0xff]
        %v1481 = vld [vmem:[%s332 + $0xb0] sm:$0xff]
        %s1482 = scalar_lea.vmem %s3, 768
        %v1483 = vld [vmem:[%s1482] sm:$0xff]
        %v1484 = vld [vmem:[%s1482 + $0x8] sm:$0xff]
        %v1485 = vld [vmem:[%s1482 + $0x10] sm:$0xff]
        %v1486 = vld [vmem:[%s1482 + $0x18] sm:$0xff]
        %v1487 = vld [vmem:[%s1482 + $0x20] sm:$0xff]
        %v1488 = vld [vmem:[%s1482 + $0x28] sm:$0xff]
        %v1489 = vld [vmem:[%s1482 + $0x30] sm:$0xff]
        %v1490 = vld [vmem:[%s1482 + $0x38] sm:$0xff]
        %v1491 = vld [vmem:[%s1482 + $0x40] sm:$0xff]
        %v1492 = vld [vmem:[%s1482 + $0x48] sm:$0xff]
        %v1493 = vld [vmem:[%s1482 + $0x50] sm:$0xff]
        %v1494 = vld [vmem:[%s1482 + $0x58] sm:$0xff]
        %v1495 = vld [vmem:[%s1482 + $0x60] sm:$0xff]
        %v1496 = vld [vmem:[%s1482 + $0x68] sm:$0xff]
        %v1497 = vld [vmem:[%s1482 + $0x70] sm:$0xff]
        %v1498 = vld [vmem:[%s1482 + $0x78] sm:$0xff]
        %1499 = vmatprep.subr.mxu0 0.0
        %1500 = vmatpush1.msra.mxu0 %v1483
        %1501 = vmatprep.subr.mxu0 0.0
        %1502 = vmatpush1.msra.mxu0 %v1484
        %1503 = vmatprep.subr.mxu0 0.0
        %1504 = vmatpush1.msra.mxu0 %v1485
        %1505 = vmatprep.subr.mxu0 0.0
        %1506 = vmatpush1.msra.mxu0 %v1486
        %1507 = vmatprep.subr.mxu0 0.0
        %1508 = vmatpush1.msra.mxu0 %v1487
        %1509 = vmatprep.subr.mxu0 0.0
        %1510 = vmatpush1.msra.mxu0 %v1488
        %1511 = vmatprep.subr.mxu0 0.0
        %1512 = vmatpush1.msra.mxu0 %v1489
        %1513 = vmatprep.subr.mxu0 0.0
        %1514 = vmatpush1.msra.mxu0 %v1490
        %1515 = vmatprep.subr.mxu0 0.0
        %1516 = vmatpush1.msra.mxu0 %v1491
        %1517 = vmatprep.subr.mxu0 0.0
        %1518 = vmatpush1.msra.mxu0 %v1492
        %1519 = vmatprep.subr.mxu0 0.0
        %1520 = vmatpush1.msra.mxu0 %v1493
        %1521 = vmatprep.subr.mxu0 0.0
        %1522 = vmatpush1.msra.mxu0 %v1494
        %1523 = vmatprep.subr.mxu0 0.0
        %1524 = vmatpush1.msra.mxu0 %v1495
        %1525 = vmatprep.subr.mxu0 0.0
        %1526 = vmatpush1.msra.mxu0 %v1496
        %1527 = vmatprep.subr.mxu0 0.0
        %1528 = vmatpush1.msra.mxu0 %v1497
        %1529 = vmatprep.subr.mxu0 0.0
        %1530 = vmatpush1.msra.mxu0 %v1498
        %1531 = vmatprep.subr.mxu0 0.0
        %1532 = vmatpush1.msra.mxu0 0.0
        %1533 = vmatprep.subr.mxu0 0.0
        %1534 = vmatpush1.msra.mxu0 0.0
        %1535 = vmatprep.subr.mxu0 0.0
        %1536 = vmatpush1.msra.mxu0 0.0
        %1537 = vmatprep.subr.mxu0 0.0
        %1538 = vmatpush1.msra.mxu0 0.0
        %1539 = vmatprep.subr.mxu0 0.0
        %1540 = vmatpush1.msra.mxu0 0.0
        %1541 = vmatprep.subr.mxu0 0.0
        %1542 = vmatpush1.msra.mxu0 0.0
        %1543 = vmatprep.subr.mxu0 0.0
        %1544 = vmatpush1.msra.mxu0 0.0
        %1545 = vmatprep.subr.mxu0 0.0
        %1546 = vmatpush1.msra.mxu0 0.0
        %1547 = vmatprep.subr.mxu0 0.0
        %1548 = vmatpush1.msra.mxu0 0.0
        %1549 = vmatprep.subr.mxu0 0.0
        %1550 = vmatpush1.msra.mxu0 0.0
        %1551 = vmatprep.subr.mxu0 0.0
        %1552 = vmatpush1.msra.mxu0 0.0
        %1553 = vmatprep.subr.mxu0 0.0
        %1554 = vmatpush1.msra.mxu0 0.0
        %1555 = vmatprep.subr.mxu0 0.0
        %1556 = vmatpush1.msra.mxu0 0.0
        %1557 = vmatprep.subr.mxu0 0.0
        %1558 = vmatpush1.msra.mxu0 0.0
        %1559 = vmatprep.subr.mxu0 0.0
        %1560 = vmatpush1.msra.mxu0 0.0
        %1561 = vmatprep.subr.mxu0 0.0
        %1562 = vmatpush1.msra.mxu0 0.0
        %1563 = vmatprep.mubr.f32.mxu0 0.0
        %1564 = vmatmul.mubr.f32.gmra.mrb[0].mxu0 %v1466
        %v1565 = vpop.f32.mrb[0].mxu0
        %v1566 = vadd.f32 0.0, %v1565
        %v1567 = vpop.f32.mrb[0].mxu0
        %1568 = vmatprep.mubr.f32.mxu0 0.0
        %1569 = vmatmul.mubr.f32.gmra.mrb[0].mxu0 %v1467
        %v1570 = vpop.f32.mrb[0].mxu0
        %v1571 = vadd.f32 0.0, %v1570
        %v1572 = vpop.f32.mrb[0].mxu0
        %1573 = vmatprep.mubr.f32.mxu0 0.0
        %1574 = vmatmul.mubr.f32.gmra.mrb[0].mxu0 %v1468
        %v1575 = vpop.f32.mrb[0].mxu0
        %v1576 = vadd.f32 0.0, %v1575
        %v1577 = vpop.f32.mrb[0].mxu0
        %1578 = vmatprep.mubr.f32.mxu0 0.0
        %1579 = vmatmul.mubr.f32.gmra.mrb[0].mxu0 %v1469
        %v1580 = vpop.f32.mrb[0].mxu0
        %v1581 = vadd.f32 0.0, %v1580
        %v1582 = vpop.f32.mrb[0].mxu0
        %1583 = vmatprep.mubr.f32.mxu0 0.0
        %1584 = vmatmul.mubr.f32.gmra.mrb[0].mxu0 %v1470
        %v1585 = vpop.f32.mrb[0].mxu0
        %v1586 = vadd.f32 0.0, %v1585
        %v1587 = vpop.f32.mrb[0].mxu0
        %1588 = vmatprep.mubr.f32.mxu0 0.0
        %1589 = vmatmul.mubr.f32.gmra.mrb[0].mxu0 %v1471
        %v1590 = vpop.f32.mrb[0].mxu0
        %v1591 = vadd.f32 0.0, %v1590
        %v1592 = vpop.f32.mrb[0].mxu0
        %1593 = vmatprep.mubr.f32.mxu0 0.0
        %1594 = vmatmul.mubr.f32.gmra.mrb[0].mxu0 %v1472
        %v1595 = vpop.f32.mrb[0].mxu0
        %v1596 = vadd.f32 0.0, %v1595
        %v1597 = vpop.f32.mrb[0].mxu0
        %1598 = vmatprep.mubr.f32.mxu0 0.0
        %1599 = vmatmul.mubr.f32.gmra.mrb[0].mxu0 %v1473
        %v1600 = vpop.f32.mrb[0].mxu0
        %v1601 = vadd.f32 0.0, %v1600
        %v1602 = vpop.f32.mrb[0].mxu0
        %1603 = vmatprep.mubr.f32.mxu0 0.0
        %1604 = vmatmul.mubr.f32.gmra.mrb[0].mxu0 %v1474
        %v1605 = vpop.f32.mrb[0].mxu0
        %v1606 = vadd.f32 0.0, %v1605
        %v1607 = vpop.f32.mrb[0].mxu0
        %1608 = vmatprep.mubr.f32.mxu0 0.0
        %1609 = vmatmul.mubr.f32.gmra.mrb[0].mxu0 %v1475
        %v1610 = vpop.f32.mrb[0].mxu0
        %v1611 = vadd.f32 0.0, %v1610
        %v1612 = vpop.f32.mrb[0].mxu0
        %1613 = vmatprep.mubr.f32.mxu0 0.0
        %1614 = vmatmul.mubr.f32.gmra.mrb[0].mxu0 %v1476
        %v1615 = vpop.f32.mrb[0].mxu0
        %v1616 = vadd.f32 0.0, %v1615
        %v1617 = vpop.f32.mrb[0].mxu0
        %1618 = vmatprep.mubr.f32.mxu0 0.0
        %1619 = vmatmul.mubr.f32.gmra.mrb[0].mxu0 %v1477
        %v1620 = vpop.f32.mrb[0].mxu0
        %v1621 = vadd.f32 0.0, %v1620
        %v1622 = vpop.f32.mrb[0].mxu0
        %1623 = vmatprep.mubr.f32.mxu0 0.0
        %1624 = vmatmul.mubr.f32.gmra.mrb[0].mxu0 %v1478
        %v1625 = vpop.f32.mrb[0].mxu0
        %v1626 = vadd.f32 0.0, %v1625
        %v1627 = vpop.f32.mrb[0].mxu0
        %1628 = vmatprep.mubr.f32.mxu0 0.0
        %1629 = vmatmul.mubr.f32.gmra.mrb[0].mxu0 %v1479
        %v1630 = vpop.f32.mrb[0].mxu0
        %v1631 = vadd.f32 0.0, %v1630
        %v1632 = vpop.f32.mrb[0].mxu0
        %1633 = vmatprep.mubr.f32.mxu0 0.0
        %1634 = vmatmul.mubr.f32.gmra.mrb[0].mxu0 %v1480
        %v1635 = vpop.f32.mrb[0].mxu0
        %v1636 = vadd.f32 0.0, %v1635
        %v1637 = vpop.f32.mrb[0].mxu0
        %1638 = vmatprep.mubr.f32.mxu0 0.0
        %1639 = vmatmul.mubr.f32.gmra.mrb[0].mxu0 %v1481
        %v1640 = vpop.f32.mrb[0].mxu0
        %v1641 = vadd.f32 0.0, %v1640
        %v1642 = vpop.f32.mrb[0].mxu0
        %1643 = vdwg.mxu0
        %v1644 = vadd.f32 %v1450, %v1566
        %v1645 = vadd.f32 %v1451, %v1571
        %v1646 = vadd.f32 %v1452, %v1576
        %v1647 = vadd.f32 %v1453, %v1581
        %v1648 = vadd.f32 %v1454, %v1586
        %v1649 = vadd.f32 %v1455, %v1591
        %v1650 = vadd.f32 %v1456, %v1596
        %v1651 = vadd.f32 %v1457, %v1601
        %v1652 = vadd.f32 %v1458, %v1606
        %v1653 = vadd.f32 %v1459, %v1611
        %v1654 = vadd.f32 %v1460, %v1616
        %v1655 = vadd.f32 %v1461, %v1621
        %v1656 = vadd.f32 %v1462, %v1626
        %v1657 = vadd.f32 %v1463, %v1631
        %v1658 = vadd.f32 %v1464, %v1636
        %v1659 = vadd.f32 %v1465, %v1641
        %v1660 = vld [vmem:[%s332 + $0x1] sm:$0xff]
        %v1661 = vld [vmem:[%s332 + $0x9] sm:$0xff]
        %v1662 = vld [vmem:[%s332 + $0x19] sm:$0xff]
        %v1663 = vld [vmem:[%s332 + $0x21] sm:$0xff]
        %v1664 = vld [vmem:[%s332 + $0x31] sm:$0xff]
        %v1665 = vld [vmem:[%s332 + $0x39] sm:$0xff]
        %v1666 = vld [vmem:[%s332 + $0x49] sm:$0xff]
        %v1667 = vld [vmem:[%s332 + $0x51] sm:$0xff]
        %v1668 = vld [vmem:[%s332 + $0x61] sm:$0xff]
        %v1669 = vld [vmem:[%s332 + $0x69] sm:$0xff]
        %v1670 = vld [vmem:[%s332 + $0x79] sm:$0xff]
        %v1671 = vld [vmem:[%s332 + $0x81] sm:$0xff]
        %v1672 = vld [vmem:[%s332 + $0x91] sm:$0xff]
        %v1673 = vld [vmem:[%s332 + $0x99] sm:$0xff]
        %v1674 = vld [vmem:[%s332 + $0xa9] sm:$0xff]
        %v1675 = vld [vmem:[%s332 + $0xb1] sm:$0xff]
        %s1676 = scalar_lea.vmem %s3, 896
        %v1677 = vld [vmem:[%s1676] sm:$0xff]
        %v1678 = vld [vmem:[%s1676 + $0x8] sm:$0xff]
        %v1679 = vld [vmem:[%s1676 + $0x10] sm:$0xff]
        %v1680 = vld [vmem:[%s1676 + $0x18] sm:$0xff]
        %v1681 = vld [vmem:[%s1676 + $0x20] sm:$0xff]
        %v1682 = vld [vmem:[%s1676 + $0x28] sm:$0xff]
        %v1683 = vld [vmem:[%s1676 + $0x30] sm:$0xff]
        %v1684 = vld [vmem:[%s1676 + $0x38] sm:$0xff]
        %v1685 = vld [vmem:[%s1676 + $0x40] sm:$0xff]
        %v1686 = vld [vmem:[%s1676 + $0x48] sm:$0xff]
        %v1687 = vld [vmem:[%s1676 + $0x50] sm:$0xff]
        %v1688 = vld [vmem:[%s1676 + $0x58] sm:$0xff]
        %v1689 = vld [vmem:[%s1676 + $0x60] sm:$0xff]
        %v1690 = vld [vmem:[%s1676 + $0x68] sm:$0xff]
        %v1691 = vld [vmem:[%s1676 + $0x70] sm:$0xff]
        %v1692 = vld [vmem:[%s1676 + $0x78] sm:$0xff]
        %1693 = vmatprep.subr.mxu0 0.0
        %1694 = vmatpush1.msra.mxu0 %v1677
        %1695 = vmatprep.subr.mxu0 0.0
        %1696 = vmatpush1.msra.mxu0 %v1678
        %1697 = vmatprep.subr.mxu0 0.0
        %1698 = vmatpush1.msra.mxu0 %v1679
        %1699 = vmatprep.subr.mxu0 0.0
        %1700 = vmatpush1.msra.mxu0 %v1680
        %1701 = vmatprep.subr.mxu0 0.0
        %1702 = vmatpush1.msra.mxu0 %v1681
        %1703 = vmatprep.subr.mxu0 0.0
        %1704 = vmatpush1.msra.mxu0 %v1682
        %1705 = vmatprep.subr.mxu0 0.0
        %1706 = vmatpush1.msra.mxu0 %v1683
        %1707 = vmatprep.subr.mxu0 0.0
        %1708 = vmatpush1.msra.mxu0 %v1684
        %1709 = vmatprep.subr.mxu0 0.0
        %1710 = vmatpush1.msra.mxu0 %v1685
        %1711 = vmatprep.subr.mxu0 0.0
        %1712 = vmatpush1.msra.mxu0 %v1686
        %1713 = vmatprep.subr.mxu0 0.0
        %1714 = vmatpush1.msra.mxu0 %v1687
        %1715 = vmatprep.subr.mxu0 0.0
        %1716 = vmatpush1.msra.mxu0 %v1688
        %1717 = vmatprep.subr.mxu0 0.0
        %1718 = vmatpush1.msra.mxu0 %v1689
        %1719 = vmatprep.subr.mxu0 0.0
        %1720 = vmatpush1.msra.mxu0 %v1690
        %1721 = vmatprep.subr.mxu0 0.0
        %1722 = vmatpush1.msra.mxu0 %v1691
        %1723 = vmatprep.subr.mxu0 0.0
        %1724 = vmatpush1.msra.mxu0 %v1692
        %1725 = vmatprep.subr.mxu0 0.0
        %1726 = vmatpush1.msra.mxu0 0.0
        %1727 = vmatprep.subr.mxu0 0.0
        %1728 = vmatpush1.msra.mxu0 0.0
        %1729 = vmatprep.subr.mxu0 0.0
        %1730 = vmatpush1.msra.mxu0 0.0
        %1731 = vmatprep.subr.mxu0 0.0
        %1732 = vmatpush1.msra.mxu0 0.0
        %1733 = vmatprep.subr.mxu0 0.0
        %1734 = vmatpush1.msra.mxu0 0.0
        %1735 = vmatprep.subr.mxu0 0.0
        %1736 = vmatpush1.msra.mxu0 0.0
        %1737 = vmatprep.subr.mxu0 0.0
        %1738 = vmatpush1.msra.mxu0 0.0
        %1739 = vmatprep.subr.mxu0 0.0
        %1740 = vmatpush1.msra.mxu0 0.0
        %1741 = vmatprep.subr.mxu0 0.0
        %1742 = vmatpush1.msra.mxu0 0.0
        %1743 = vmatprep.subr.mxu0 0.0
        %1744 = vmatpush1.msra.mxu0 0.0
        %1745 = vmatprep.subr.mxu0 0.0
        %1746 = vmatpush1.msra.mxu0 0.0
        %1747 = vmatprep.subr.mxu0 0.0
        %1748 = vmatpush1.msra.mxu0 0.0
        %1749 = vmatprep.subr.mxu0 0.0
        %1750 = vmatpush1.msra.mxu0 0.0
        %1751 = vmatprep.subr.mxu0 0.0
        %1752 = vmatpush1.msra.mxu0 0.0
        %1753 = vmatprep.subr.mxu0 0.0
        %1754 = vmatpush1.msra.mxu0 0.0
        %1755 = vmatprep.subr.mxu0 0.0
        %1756 = vmatpush1.msra.mxu0 0.0
        %1757 = vmatprep.mubr.f32.mxu0 0.0
        %1758 = vmatmul.mubr.f32.gmra.mrb[0].mxu0 %v1660
        %v1759 = vpop.f32.mrb[0].mxu0
        %v1760 = vadd.f32 0.0, %v1759
        %v1761 = vpop.f32.mrb[0].mxu0
        %1762 = vmatprep.mubr.f32.mxu0 0.0
        %1763 = vmatmul.mubr.f32.gmra.mrb[0].mxu0 %v1661
        %v1764 = vpop.f32.mrb[0].mxu0
        %v1765 = vadd.f32 0.0, %v1764
        %v1766 = vpop.f32.mrb[0].mxu0
        %1767 = vmatprep.mubr.f32.mxu0 0.0
        %1768 = vmatmul.mubr.f32.gmra.mrb[0].mxu0 %v1662
        %v1769 = vpop.f32.mrb[0].mxu0
        %v1770 = vadd.f32 0.0, %v1769
        %v1771 = vpop.f32.mrb[0].mxu0
        %1772 = vmatprep.mubr.f32.mxu0 0.0
        %1773 = vmatmul.mubr.f32.gmra.mrb[0].mxu0 %v1663
        %v1774 = vpop.f32.mrb[0].mxu0
        %v1775 = vadd.f32 0.0, %v1774
        %v1776 = vpop.f32.mrb[0].mxu0
        %1777 = vmatprep.mubr.f32.mxu0 0.0
        %1778 = vmatmul.mubr.f32.gmra.mrb[0].mxu0 %v1664
        %v1779 = vpop.f32.mrb[0].mxu0
        %v1780 = vadd.f32 0.0, %v1779
        %v1781 = vpop.f32.mrb[0].mxu0
        %1782 = vmatprep.mubr.f32.mxu0 0.0
        %1783 = vmatmul.mubr.f32.gmra.mrb[0].mxu0 %v1665
        %v1784 = vpop.f32.mrb[0].mxu0
        %v1785 = vadd.f32 0.0, %v1784
        %v1786 = vpop.f32.mrb[0].mxu0
        %1787 = vmatprep.mubr.f32.mxu0 0.0
        %1788 = vmatmul.mubr.f32.gmra.mrb[0].mxu0 %v1666
        %v1789 = vpop.f32.mrb[0].mxu0
        %v1790 = vadd.f32 0.0, %v1789
        %v1791 = vpop.f32.mrb[0].mxu0
        %1792 = vmatprep.mubr.f32.mxu0 0.0
        %1793 = vmatmul.mubr.f32.gmra.mrb[0].mxu0 %v1667
        %v1794 = vpop.f32.mrb[0].mxu0
        %v1795 = vadd.f32 0.0, %v1794
        %v1796 = vpop.f32.mrb[0].mxu0
        %1797 = vmatprep.mubr.f32.mxu0 0.0
        %1798 = vmatmul.mubr.f32.gmra.mrb[0].mxu0 %v1668
        %v1799 = vpop.f32.mrb[0].mxu0
        %v1800 = vadd.f32 0.0, %v1799
        %v1801 = vpop.f32.mrb[0].mxu0
        %1802 = vmatprep.mubr.f32.mxu0 0.0
        %1803 = vmatmul.mubr.f32.gmra.mrb[0].mxu0 %v1669
        %v1804 = vpop.f32.mrb[0].mxu0
        %v1805 = vadd.f32 0.0, %v1804
        %v1806 = vpop.f32.mrb[0].mxu0
        %1807 = vmatprep.mubr.f32.mxu0 0.0
        %1808 = vmatmul.mubr.f32.gmra.mrb[0].mxu0 %v1670
        %v1809 = vpop.f32.mrb[0].mxu0
        %v1810 = vadd.f32 0.0, %v1809
        %v1811 = vpop.f32.mrb[0].mxu0
        %1812 = vmatprep.mubr.f32.mxu0 0.0
        %1813 = vmatmul.mubr.f32.gmra.mrb[0].mxu0 %v1671
        %v1814 = vpop.f32.mrb[0].mxu0
        %v1815 = vadd.f32 0.0, %v1814
        %v1816 = vpop.f32.mrb[0].mxu0
        %1817 = vmatprep.mubr.f32.mxu0 0.0
        %1818 = vmatmul.mubr.f32.gmra.mrb[0].mxu0 %v1672
        %v1819 = vpop.f32.mrb[0].mxu0
        %v1820 = vadd.f32 0.0, %v1819
        %v1821 = vpop.f32.mrb[0].mxu0
        %1822 = vmatprep.mubr.f32.mxu0 0.0
        %1823 = vmatmul.mubr.f32.gmra.mrb[0].mxu0 %v1673
        %v1824 = vpop.f32.mrb[0].mxu0
        %v1825 = vadd.f32 0.0, %v1824
        %v1826 = vpop.f32.mrb[0].mxu0
        %1827 = vmatprep.mubr.f32.mxu0 0.0
        %1828 = vmatmul.mubr.f32.gmra.mrb[0].mxu0 %v1674
        %v1829 = vpop.f32.mrb[0].mxu0
        %v1830 = vadd.f32 0.0, %v1829
        %v1831 = vpop.f32.mrb[0].mxu0
        %1832 = vmatprep.mubr.f32.mxu0 0.0
        %1833 = vmatmul.mubr.f32.gmra.mrb[0].mxu0 %v1675
        %v1834 = vpop.f32.mrb[0].mxu0
        %v1835 = vadd.f32 0.0, %v1834
        %v1836 = vpop.f32.mrb[0].mxu0
        %1837 = vdwg.mxu0
        %v1838 = vadd.f32 %v1644, %v1760
        %v1839 = vadd.f32 %v1645, %v1765
        %v1840 = vadd.f32 %v1646, %v1770
        %v1841 = vadd.f32 %v1647, %v1775
        %v1842 = vadd.f32 %v1648, %v1780
        %v1843 = vadd.f32 %v1649, %v1785
        %v1844 = vadd.f32 %v1650, %v1790
        %v1845 = vadd.f32 %v1651, %v1795
        %v1846 = vadd.f32 %v1652, %v1800
        %v1847 = vadd.f32 %v1653, %v1805
        %v1848 = vadd.f32 %v1654, %v1810
        %v1849 = vadd.f32 %v1655, %v1815
        %v1850 = vadd.f32 %v1656, %v1820
        %v1851 = vadd.f32 %v1657, %v1825
        %v1852 = vadd.f32 %v1658, %v1830
        %v1853 = vadd.f32 %v1659, %v1835
        %v1854 = vld [vmem:[%s332 + $0x2] sm:$0xff]
        %v1855 = vld [vmem:[%s332 + $0xa] sm:$0xff]
        %v1856 = vld [vmem:[%s332 + $0x1a] sm:$0xff]
        %v1857 = vld [vmem:[%s332 + $0x22] sm:$0xff]
        %v1858 = vld [vmem:[%s332 + $0x32] sm:$0xff]
        %v1859 = vld [vmem:[%s332 + $0x3a] sm:$0xff]
        %v1860 = vld [vmem:[%s332 + $0x4a] sm:$0xff]
        %v1861 = vld [vmem:[%s332 + $0x52] sm:$0xff]
        %v1862 = vld [vmem:[%s332 + $0x62] sm:$0xff]
        %v1863 = vld [vmem:[%s332 + $0x6a] sm:$0xff]
        %v1864 = vld [vmem:[%s332 + $0x7a] sm:$0xff]
        %v1865 = vld [vmem:[%s332 + $0x82] sm:$0xff]
        %v1866 = vld [vmem:[%s332 + $0x92] sm:$0xff]
        %v1867 = vld [vmem:[%s332 + $0x9a] sm:$0xff]
        %v1868 = vld [vmem:[%s332 + $0xaa] sm:$0xff]
        %v1869 = vld [vmem:[%s332 + $0xb2] sm:$0xff]
        %s1870 = scalar_lea.vmem %s3, 1024
        %v1871 = vld [vmem:[%s1870] sm:$0xff]
        %v1872 = vld [vmem:[%s1870 + $0x8] sm:$0xff]
        %v1873 = vld [vmem:[%s1870 + $0x10] sm:$0xff]
        %v1874 = vld [vmem:[%s1870 + $0x18] sm:$0xff]
        %v1875 = vld [vmem:[%s1870 + $0x20] sm:$0xff]
        %v1876 = vld [vmem:[%s1870 + $0x28] sm:$0xff]
        %v1877 = vld [vmem:[%s1870 + $0x30] sm:$0xff]
        %v1878 = vld [vmem:[%s1870 + $0x38] sm:$0xff]
        %v1879 = vld [vmem:[%s1870 + $0x40] sm:$0xff]
        %v1880 = vld [vmem:[%s1870 + $0x48] sm:$0xff]
        %v1881 = vld [vmem:[%s1870 + $0x50] sm:$0xff]
        %v1882 = vld [vmem:[%s1870 + $0x58] sm:$0xff]
        %v1883 = vld [vmem:[%s1870 + $0x60] sm:$0xff]
        %v1884 = vld [vmem:[%s1870 + $0x68] sm:$0xff]
        %v1885 = vld [vmem:[%s1870 + $0x70] sm:$0xff]
        %v1886 = vld [vmem:[%s1870 + $0x78] sm:$0xff]
        %1887 = vmatprep.subr.mxu0 0.0
        %1888 = vmatpush1.msra.mxu0 %v1871
        %1889 = vmatprep.subr.mxu0 0.0
        %1890 = vmatpush1.msra.mxu0 %v1872
        %1891 = vmatprep.subr.mxu0 0.0
        %1892 = vmatpush1.msra.mxu0 %v1873
        %1893 = vmatprep.subr.mxu0 0.0
        %1894 = vmatpush1.msra.mxu0 %v1874
        %1895 = vmatprep.subr.mxu0 0.0
        %1896 = vmatpush1.msra.mxu0 %v1875
        %1897 = vmatprep.subr.mxu0 0.0
        %1898 = vmatpush1.msra.mxu0 %v1876
        %1899 = vmatprep.subr.mxu0 0.0
        %1900 = vmatpush1.msra.mxu0 %v1877
        %1901 = vmatprep.subr.mxu0 0.0
        %1902 = vmatpush1.msra.mxu0 %v1878
        %1903 = vmatprep.subr.mxu0 0.0
        %1904 = vmatpush1.msra.mxu0 %v1879
        %1905 = vmatprep.subr.mxu0 0.0
        %1906 = vmatpush1.msra.mxu0 %v1880
        %1907 = vmatprep.subr.mxu0 0.0
        %1908 = vmatpush1.msra.mxu0 %v1881
        %1909 = vmatprep.subr.mxu0 0.0
        %1910 = vmatpush1.msra.mxu0 %v1882
        %1911 = vmatprep.subr.mxu0 0.0
        %1912 = vmatpush1.msra.mxu0 %v1883
        %1913 = vmatprep.subr.mxu0 0.0
        %1914 = vmatpush1.msra.mxu0 %v1884
        %1915 = vmatprep.subr.mxu0 0.0
        %1916 = vmatpush1.msra.mxu0 %v1885
        %1917 = vmatprep.subr.mxu0 0.0
        %1918 = vmatpush1.msra.mxu0 %v1886
        %1919 = vmatprep.subr.mxu0 0.0
        %1920 = vmatpush1.msra.mxu0 0.0
        %1921 = vmatprep.subr.mxu0 0.0
        %1922 = vmatpush1.msra.mxu0 0.0
        %1923 = vmatprep.subr.mxu0 0.0
        %1924 = vmatpush1.msra.mxu0 0.0
        %1925 = vmatprep.subr.mxu0 0.0
        %1926 = vmatpush1.msra.mxu0 0.0
        %1927 = vmatprep.subr.mxu0 0.0
        %1928 = vmatpush1.msra.mxu0 0.0
        %1929 = vmatprep.subr.mxu0 0.0
        %1930 = vmatpush1.msra.mxu0 0.0
        %1931 = vmatprep.subr.mxu0 0.0
        %1932 = vmatpush1.msra.mxu0 0.0
        %1933 = vmatprep.subr.mxu0 0.0
        %1934 = vmatpush1.msra.mxu0 0.0
        %1935 = vmatprep.subr.mxu0 0.0
        %1936 = vmatpush1.msra.mxu0 0.0
        %1937 = vmatprep.subr.mxu0 0.0
        %1938 = vmatpush1.msra.mxu0 0.0
        %1939 = vmatprep.subr.mxu0 0.0
        %1940 = vmatpush1.msra.mxu0 0.0
        %1941 = vmatprep.subr.mxu0 0.0
        %1942 = vmatpush1.msra.mxu0 0.0
        %1943 = vmatprep.subr.mxu0 0.0
        %1944 = vmatpush1.msra.mxu0 0.0
        %1945 = vmatprep.subr.mxu0 0.0
        %1946 = vmatpush1.msra.mxu0 0.0
        %1947 = vmatprep.subr.mxu0 0.0
        %1948 = vmatpush1.msra.mxu0 0.0
        %1949 = vmatprep.subr.mxu0 0.0
        %1950 = vmatpush1.msra.mxu0 0.0
        %1951 = vmatprep.mubr.f32.mxu0 0.0
        %1952 = vmatmul.mubr.f32.gmra.mrb[0].mxu0 %v1854
        %v1953 = vpop.f32.mrb[0].mxu0
        %v1954 = vadd.f32 0.0, %v1953
        %v1955 = vpop.f32.mrb[0].mxu0
        %1956 = vmatprep.mubr.f32.mxu0 0.0
        %1957 = vmatmul.mubr.f32.gmra.mrb[0].mxu0 %v1855
        %v1958 = vpop.f32.mrb[0].mxu0
        %v1959 = vadd.f32 0.0, %v1958
        %v1960 = vpop.f32.mrb[0].mxu0
        %1961 = vmatprep.mubr.f32.mxu0 0.0
        %1962 = vmatmul.mubr.f32.gmra.mrb[0].mxu0 %v1856
        %v1963 = vpop.f32.mrb[0].mxu0
        %v1964 = vadd.f32 0.0, %v1963
        %v1965 = vpop.f32.mrb[0].mxu0
        %1966 = vmatprep.mubr.f32.mxu0 0.0
        %1967 = vmatmul.mubr.f32.gmra.mrb[0].mxu0 %v1857
        %v1968 = vpop.f32.mrb[0].mxu0
        %v1969 = vadd.f32 0.0, %v1968
        %v1970 = vpop.f32.mrb[0].mxu0
        %1971 = vmatprep.mubr.f32.mxu0 0.0
        %1972 = vmatmul.mubr.f32.gmra.mrb[0].mxu0 %v1858
        %v1973 = vpop.f32.mrb[0].mxu0
        %v1974 = vadd.f32 0.0, %v1973
        %v1975 = vpop.f32.mrb[0].mxu0
        %1976 = vmatprep.mubr.f32.mxu0 0.0
        %1977 = vmatmul.mubr.f32.gmra.mrb[0].mxu0 %v1859
        %v1978 = vpop.f32.mrb[0].mxu0
        %v1979 = vadd.f32 0.0, %v1978
        %v1980 = vpop.f32.mrb[0].mxu0
        %1981 = vmatprep.mubr.f32.mxu0 0.0
        %1982 = vmatmul.mubr.f32.gmra.mrb[0].mxu0 %v1860
        %v1983 = vpop.f32.mrb[0].mxu0
        %v1984 = vadd.f32 0.0, %v1983
        %v1985 = vpop.f32.mrb[0].mxu0
        %1986 = vmatprep.mubr.f32.mxu0 0.0
        %1987 = vmatmul.mubr.f32.gmra.mrb[0].mxu0 %v1861
        %v1988 = vpop.f32.mrb[0].mxu0
        %v1989 = vadd.f32 0.0, %v1988
        %v1990 = vpop.f32.mrb[0].mxu0
        %1991 = vmatprep.mubr.f32.mxu0 0.0
        %1992 = vmatmul.mubr.f32.gmra.mrb[0].mxu0 %v1862
        %v1993 = vpop.f32.mrb[0].mxu0
        %v1994 = vadd.f32 0.0, %v1993
        %v1995 = vpop.f32.mrb[0].mxu0
        %1996 = vmatprep.mubr.f32.mxu0 0.0
        %1997 = vmatmul.mubr.f32.gmra.mrb[0].mxu0 %v1863
        %v1998 = vpop.f32.mrb[0].mxu0
        %v1999 = vadd.f32 0.0, %v1998
        %v2000 = vpop.f32.mrb[0].mxu0
        %2001 = vmatprep.mubr.f32.mxu0 0.0
        %2002 = vmatmul.mubr.f32.gmra.mrb[0].mxu0 %v1864
        %v2003 = vpop.f32.mrb[0].mxu0
        %v2004 = vadd.f32 0.0, %v2003
        %v2005 = vpop.f32.mrb[0].mxu0
        %2006 = vmatprep.mubr.f32.mxu0 0.0
        %2007 = vmatmul.mubr.f32.gmra.mrb[0].mxu0 %v1865
        %v2008 = vpop.f32.mrb[0].mxu0
        %v2009 = vadd.f32 0.0, %v2008
        %v2010 = vpop.f32.mrb[0].mxu0
        %2011 = vmatprep.mubr.f32.mxu0 0.0
        %2012 = vmatmul.mubr.f32.gmra.mrb[0].mxu0 %v1866
        %v2013 = vpop.f32.mrb[0].mxu0
        %v2014 = vadd.f32 0.0, %v2013
        %v2015 = vpop.f32.mrb[0].mxu0
        %2016 = vmatprep.mubr.f32.mxu0 0.0
        %2017 = vmatmul.mubr.f32.gmra.mrb[0].mxu0 %v1867
        %v2018 = vpop.f32.mrb[0].mxu0
        %v2019 = vadd.f32 0.0, %v2018
        %v2020 = vpop.f32.mrb[0].mxu0
        %2021 = vmatprep.mubr.f32.mxu0 0.0
        %2022 = vmatmul.mubr.f32.gmra.mrb[0].mxu0 %v1868
        %v2023 = vpop.f32.mrb[0].mxu0
        %v2024 = vadd.f32 0.0, %v2023
        %v2025 = vpop.f32.mrb[0].mxu0
        %2026 = vmatprep.mubr.f32.mxu0 0.0
        %2027 = vmatmul.mubr.f32.gmra.mrb[0].mxu0 %v1869
        %v2028 = vpop.f32.mrb[0].mxu0
        %v2029 = vadd.f32 0.0, %v2028
        %v2030 = vpop.f32.mrb[0].mxu0
        %2031 = vdwg.mxu0
        %v2032 = vadd.f32 %v1838, %v1954
        %v2033 = vadd.f32 %v1839, %v1959
        %v2034 = vadd.f32 %v1840, %v1964
        %v2035 = vadd.f32 %v1841, %v1969
        %v2036 = vadd.f32 %v1842, %v1974
        %v2037 = vadd.f32 %v1843, %v1979
        %v2038 = vadd.f32 %v1844, %v1984
        %v2039 = vadd.f32 %v1845, %v1989
        %v2040 = vadd.f32 %v1846, %v1994
        %v2041 = vadd.f32 %v1847, %v1999
        %v2042 = vadd.f32 %v1848, %v2004
        %v2043 = vadd.f32 %v1849, %v2009
        %v2044 = vadd.f32 %v1850, %v2014
        %v2045 = vadd.f32 %v1851, %v2019
        %v2046 = vadd.f32 %v1852, %v2024
        %v2047 = vadd.f32 %v1853, %v2029
        %v2048 = vld [vmem:[%s4] sm:$0x1]
        %v2050 = vlaneseq
        %v2051 = vshrl.u32 %v2050, 7
        %v2052 = vsub.s32 0, %v2051
        %v2053 = vrot.slane %v2048, %v2052
        %v2055 = vadd.f32 %v2032, %v2053
        %v2056 = vadd.f32 %v2033, %v2053
        %v2057 = vadd.f32 %v2034, %v2053
        %v2058 = vadd.f32 %v2035, %v2053
        %v2059 = vadd.f32 %v2036, %v2053
        %v2060 = vadd.f32 %v2037, %v2053
        %v2061 = vadd.f32 %v2038, %v2053
        %v2062 = vadd.f32 %v2039, %v2053
        %v2063 = vadd.f32 %v2040, %v2053
        %v2064 = vadd.f32 %v2041, %v2053
        %v2065 = vadd.f32 %v2042, %v2053
        %v2066 = vadd.f32 %v2043, %v2053
        %v2067 = vadd.f32 %v2044, %v2053
        %v2068 = vadd.f32 %v2045, %v2053
        %v2069 = vadd.f32 %v2046, %v2053
        %v2070 = vadd.f32 %v2047, %v2053
        %v2071 = vmax.f32 %v2055, 0.0
        %v2072 = vmax.f32 %v2056, 0.0
        %v2073 = vmax.f32 %v2057, 0.0
        %v2074 = vmax.f32 %v2058, 0.0
        %v2075 = vmax.f32 %v2059, 0.0
        %v2076 = vmax.f32 %v2060, 0.0
        %v2077 = vmax.f32 %v2061, 0.0
        %v2078 = vmax.f32 %v2062, 0.0
        %v2079 = vmax.f32 %v2063, 0.0
        %v2080 = vmax.f32 %v2064, 0.0
        %v2081 = vmax.f32 %v2065, 0.0
        %v2082 = vmax.f32 %v2066, 0.0
        %v2083 = vmax.f32 %v2067, 0.0
        %v2084 = vmax.f32 %v2068, 0.0
        %v2085 = vmax.f32 %v2069, 0.0
        %v2086 = vmax.f32 %v2070, 0.0
        %2087 = vst [vmem:[%s300] sm:$0xff] %v2071
        %2088 = vst [vmem:[%s300 + $0x8] sm:$0xff] %v2072
        %2089 = vst [vmem:[%s300 + $0x10] sm:$0xff] %v2073
        %2090 = vst [vmem:[%s300 + $0x18] sm:$0xff] %v2074
        %2091 = vst [vmem:[%s300 + $0x20] sm:$0xff] %v2075
        %2092 = vst [vmem:[%s300 + $0x28] sm:$0xff] %v2076
        %2093 = vst [vmem:[%s300 + $0x30] sm:$0xff] %v2077
        %2094 = vst [vmem:[%s300 + $0x38] sm:$0xff] %v2078
        %2095 = vst [vmem:[%s300 + $0x40] sm:$0xff] %v2079
        %2096 = vst [vmem:[%s300 + $0x48] sm:$0xff] %v2080
        %2097 = vst [vmem:[%s300 + $0x50] sm:$0xff] %v2081
        %2098 = vst [vmem:[%s300 + $0x58] sm:$0xff] %v2082
        %2099 = vst [vmem:[%s300 + $0x60] sm:$0xff] %v2083
        %2100 = vst [vmem:[%s300 + $0x68] sm:$0xff] %v2084
        %2101 = vst [vmem:[%s300 + $0x70] sm:$0xff] %v2085
        %2102 = vst [vmem:[%s300 + $0x78] sm:$0xff] %v2086
        %s2103 = sand.u32 %s167, 1
        %s2104 = scalar_lea.sflag [#allocation3], %s2103
        %s2105 = sand.u32 %s167, 1
        %s2106 = smul.addr %s2105, 128
        %s2107 = scalar_lea.vmem [#allocation2], %s2106
        // Predicated region
        $region41: #{tpu_custom_call.1} parent=39 // pred_check
          %p2108 = pneg %p177
        $region42: #{tpu_custom_call.1} parent=39 // pred_check_branch
          %2110 = sbr.rel (%p2108) target = $region44
        $region43: #{tpu_custom_call.1} parent=39 // pred_region
          %s2111 = smul.u32 8, %s24
          %s2113 = ssub.s32 2048, 2048
          %2114 = vsyncadd %s2104, %s2113
          %s2115 = smul.addr %s2111, 2
          %s2116 = smul.addr %s23, 32
          %s2117 = sadd.s32 %s2115, %s2116
          %s2118 = smul.addr %s2117, 128
          %s2119 = scalar_lea.hbm %s5, %s2118
          %s2120 = sshll.u32 %s2107, 4
          %s2121 = int_to_ptr.vmem [resolvable:$true] %s2120
          %2126 = dma.vmem_to_hbm [thread:$0]  %s2121, 2048, %s2119, %s2104, 128, 128, 8
        $region44: #{tpu_custom_call.1} parent=39 // pred_fallthru
          _
      $region40: #{tpu_custom_call.1} parent=5 // pred_fallthru
        _
      %p2127 = scmp.le.s32.totalorder 2, %s14
      // Predicated region
      $region45: #{tpu_custom_call.1} parent=5 // pred_check
        %p2128 = pneg %p2127
      $region46: #{tpu_custom_call.1} parent=5 // pred_check_branch
        %2130 = sbr.rel (%p2128) target = $region48
      $region47: #{tpu_custom_call.1} parent=5 // pred_region
        %s2131 = ssub.s32 %s14, 2
        // Predicated region
        $region49: #{tpu_custom_call.1} parent=47 // pred_check
          %p2132 = pneg %p183
        $region50: #{tpu_custom_call.1} parent=47 // pred_check_branch
          %2134 = sbr.rel (%p2132) target = $region52
        $region51: #{tpu_custom_call.1} parent=47 // pred_region
          %s2135 = sand.u32 %s168, 1
          %s2136 = scalar_lea.sflag [#allocation3], %s2135
          %s2137 = sand.u32 %s168, 1
          %s2138 = smul.addr %s2137, 128
          %s2139 = scalar_lea.vmem [#allocation2], %s2138
          %2140 = dma.done %s2136, 2048
        $region52: #{tpu_custom_call.1} parent=47 // pred_fallthru
          _
      $region48: #{tpu_custom_call.1} parent=5 // pred_fallthru
        _
    $region6: #{tpu_custom_call.1} parent=1 // loop_footer
      %s18 = sadd.s32 1, %s14
    $region7: #{tpu_custom_call.1} parent=1 // loop_footer_branch
      %13 = sbr.rel target = $region3
    $region8: #{tpu_custom_call.1} parent=1 // loop_exit
      _
    %2141 = vsyncpa [#allocation3], 1
    %s2142 = scalar_lea.sflag [#allocation3], 1
    %2143 = vsyncpa %s2142, 1

</llo_original>
